<compile_context>
chip_gen: v7x
topology: tpu7x:2x2x1
jax: 0.10.0
libtpu: 0.0.40
codegen_flags: <defaults>
</compile_context>

<pallas_src>
import functools
import math

import jax
import jax.numpy as jnp
from jax.experimental import pallas as pl
from jax.experimental.pallas import tpu as pltpu


def make_lstm_kernel(num_layers: int, hidden_dim: int, batch: int, seq: int):
    H, B, T = hidden_dim, batch, seq
    G = 4 * H

    def kernel(*refs):
        # refs = [x2d, w_ih0, w_hh0, b0, (w_ih_l, w_hh_l, b_l) for l>=1, w_fc, b_fc, out]
        x_ref = refs[0]          # (T*B, D)
        w_ih0 = refs[1]          # (D, 4H)
        w_hh0 = refs[2]          # (H, 4H)
        b0 = refs[3]             # (1, 4H)
        idx = 4
        upper = []
        for _ in range(num_layers - 1):
            upper.append((refs[idx], refs[idx + 1], refs[idx + 2]))  # (H,4H),(H,4H),(1,4H)
            idx += 3
        wfc_ref = refs[idx]      # (H, out_dim)
        bfc_ref = refs[idx + 1]  # (1, out_dim)
        out_ref = refs[idx + 2]  # (B, out_dim)

        # (4) Layer-0 input projection (+ bias) for every timestep in one matmul, kept as a
        # live value (T*B x 4H f32 = 8 vregs at these shapes) -- no scratch round trip.
        pre = (
            jnp.dot(x_ref[...], w_ih0[...], preferred_element_type=jnp.float32)
            + b0[...]
        )

        # (5) Upper-layer biases: broadcast once, hoisted out of the unrolled loop.
        upper_b = [jnp.broadcast_to(b_ref[...], (B, G)) for (_, _, b_ref) in upper]

        # (2) sigmoid(x) = 0.5*tanh(0.5*x) + 0.5 for the i/f/o gate blocks, tanh(x) for the g
        # block -> one whole-vreg EUP tanh per (t, layer), with a precomputed per-lane
        # scale/shift selected by an iota lane mask.
        lane = jax.lax.broadcasted_iota(jnp.int32, (B, G), 1)
        is_g = jnp.logical_and(lane >= 2 * H, lane < 3 * H)
        gate_scale = jnp.where(is_g, 1.0, 0.5).astype(jnp.float32)
        gate_shift = jnp.where(is_g, 0.0, 0.5).astype(jnp.float32)

        def gate_act(gates, c_prev):
            t = jnp.tanh(gates * gate_scale)
            act = t * gate_scale + gate_shift      # [sig(i) | sig(f) | tanh(g) | sig(o)]
            # Static lane slices of one 128-lane vreg; Mosaic lowers the unaligned ones to
            # single XLU lane rotations (equivalent to iota-mask + roll extraction).
            i_g = act[:, 0 * H:1 * H]
            f_g = act[:, 1 * H:2 * H]
            g_g = act[:, 2 * H:3 * H]
            o_g = act[:, 3 * H:4 * H]
            c_new = f_g * c_prev + i_g * g_g
            h_new = o_g * jnp.tanh(c_new)
            return h_new, c_new

        hs = [jnp.zeros((B, H), jnp.float32) for _ in range(num_layers)]
        cs = [jnp.zeros((B, H), jnp.float32) for _ in range(num_layers)]

        # (6) Fully-unrolled time loop (T is small and static).
        for t in range(T):
            # Layer 0: only the recurrent h @ W_hh dot is on the serialized critical path.
            gates0 = pre[t * B:(t + 1) * B, :] + jnp.dot(
                hs[0], w_hh0[...], preferred_element_type=jnp.float32
            )
            hs[0], cs[0] = gate_act(gates0, cs[0])
            # Layers >= 1: two natural-shape dots summed (no concatenate -> no lane seam).
            for l in range(1, num_layers):
                w_ih_ref, w_hh_ref, _ = upper[l - 1]
                gates = (
                    jnp.dot(hs[l - 1], w_ih_ref[...], preferred_element_type=jnp.float32)
                    + jnp.dot(hs[l], w_hh_ref[...], preferred_element_type=jnp.float32)
                    + upper_b[l - 1]
                )
                hs[l], cs[l] = gate_act(gates, cs[l])

        # Final Linear head on the top layer's last hidden state.
        out_ref[...] = (
            jnp.dot(hs[num_layers - 1], wfc_ref[...], preferred_element_type=jnp.float32)
            + bfc_ref[...]
        )

    return kernel


def prepare_params(params, *, num_layers):
    """(3) One-time conversion of parameters into the kernel's flat input tuple.

    With the unpadded layout no gate padding/stacking is needed; this just fixes dtype and
    ordering once so the steady-state forward path does no host-side weight prep.
    """
    flat = []
    for l in range(num_layers):
        w_ih, w_hh, b = params["layers"][l]
        flat += [
            jnp.asarray(w_ih, jnp.float32),   # (in_dim, 4H)
            jnp.asarray(w_hh, jnp.float32),   # (H, 4H)
            jnp.asarray(b, jnp.float32),      # (1, 4H)  (b_ih + b_hh pre-summed)
        ]
    flat += [
        jnp.asarray(params["w_fc"], jnp.float32),   # (H, out_dim)
        jnp.asarray(params["b_fc"], jnp.float32),   # (1, out_dim)
    ]
    return tuple(jax.device_put(a) for a in flat)


@functools.partial(jax.jit, static_argnames=("num_layers", "hidden_dim", "output_dim"))
def lstm_forward(x, prepared, *, num_layers, hidden_dim, output_dim):
    """x: (batch, seq, input_dim) float32, batch_first like PyTorch."""
    B, T, D = x.shape
    # Time-major flatten so the layer-0 input projection is one big matmul in-kernel.
    x2d = jnp.transpose(x, (1, 0, 2)).reshape(T * B, D)

    kernel = make_lstm_kernel(num_layers, hidden_dim, B, T)
    n_in = 1 + len(prepared)
    return pl.pallas_call(
        kernel,
        out_shape=jax.ShapeDtypeStruct((B, output_dim), jnp.float32),
        in_specs=[pl.BlockSpec(memory_space=pltpu.MemorySpace.VMEM)] * n_in,
        out_specs=pl.BlockSpec(memory_space=pltpu.MemorySpace.VMEM),
        compiler_params=pltpu.CompilerParams(vmem_limit_bytes=32 * 1024 * 1024),
    )(x2d, *prepared)


def init_params(key, input_dim, hidden_dim, num_layers, output_dim):
    """PyTorch-style uniform init. Weights stored pre-transposed (in_dim, 4H)."""
    params = {"layers": []}
    k_lstm = 1.0 / math.sqrt(hidden_dim)
    for l in range(num_layers):
        in_dim = input_dim if l == 0 else hidden_dim
        key, k1, k2, k3, k4 = jax.random.split(key, 5)
        w_ih = jax.random.uniform(k1, (in_dim, 4 * hidden_dim), jnp.float32, -k_lstm, k_lstm)
        w_hh = jax.random.uniform(k2, (hidden_dim, 4 * hidden_dim), jnp.float32, -k_lstm, k_lstm)
        b_ih = jax.random.uniform(k3, (1, 4 * hidden_dim), jnp.float32, -k_lstm, k_lstm)
        b_hh = jax.random.uniform(k4, (1, 4 * hidden_dim), jnp.float32, -k_lstm, k_lstm)
        params["layers"].append((w_ih, w_hh, b_ih + b_hh))
    k_fc = 1.0 / math.sqrt(hidden_dim)
    key, k1, k2 = jax.random.split(key, 3)
    params["w_fc"] = jax.random.uniform(k1, (hidden_dim, output_dim), jnp.float32, -k_fc, k_fc)
    params["b_fc"] = jax.random.uniform(k2, (1, output_dim), jnp.float32, -k_fc, k_fc)
    return params


def lstm_forward_ref(x, params, *, num_layers, hidden_dim, output_dim):
    """Pure-JAX reference for correctness checking."""
    B, T, D = x.shape
    H = hidden_dim
    hs = [jnp.zeros((B, H), jnp.float32) for _ in range(num_layers)]
    cs = [jnp.zeros((B, H), jnp.float32) for _ in range(num_layers)]
    for t in range(T):
        inp = x[:, t, :]
        for l in range(num_layers):
            w_ih, w_hh, b = params["layers"][l]
            gates = inp @ w_ih + hs[l] @ w_hh + b
            i_g = jax.nn.sigmoid(gates[:, 0:H])
            f_g = jax.nn.sigmoid(gates[:, H:2 * H])
            g_g = jnp.tanh(gates[:, 2 * H:3 * H])
            o_g = jax.nn.sigmoid(gates[:, 3 * H:4 * H])
            cs[l] = f_g * cs[l] + i_g * g_g
            hs[l] = o_g * jnp.tanh(cs[l])
            inp = hs[l]
    return hs[-1] @ params["w_fc"] + params["b_fc"]


if __name__ == "__main__":
    # Small, LSTM-appropriate shapes: batch=8, seq=8, input_dim=16, hidden=32, 2 layers, output=1
    BATCH, SEQ, INPUT_DIM = 8, 8, 16
    HIDDEN_DIM, NUM_LAYERS, OUTPUT_DIM = 32, 2, 1

    key = jax.random.PRNGKey(0)
    key, kx, kp = jax.random.split(key, 3)
    x = jax.random.normal(kx, (BATCH, SEQ, INPUT_DIM), jnp.float32)
    params = init_params(kp, INPUT_DIM, HIDDEN_DIM, NUM_LAYERS, OUTPUT_DIM)

    # One-time weight preparation (outside the steady-state forward path).
    prepared = prepare_params(params, num_layers=NUM_LAYERS)

    out = jax.block_until_ready(
        lstm_forward(
            x, prepared,
            num_layers=NUM_LAYERS, hidden_dim=HIDDEN_DIM, output_dim=OUTPUT_DIM,
        )
    )

    ref = lstm_forward_ref(
        x, params, num_layers=NUM_LAYERS, hidden_dim=HIDDEN_DIM, output_dim=OUTPUT_DIM
    )
    assert out.shape == (BATCH, OUTPUT_DIM)
    assert jnp.allclose(out, ref, rtol=1e-4, atol=1e-4)

    print("KERNEL_OK")
</pallas_src>

<mosaic_0001>
module attributes {stable_mosaic.version = 11 : i64} {
  func.func @kernel(%arg0: memref<64x16xf32, #tpu.memory_space<vmem>>, %arg1: memref<16x128xf32, #tpu.memory_space<vmem>>, %arg2: memref<32x128xf32, #tpu.memory_space<vmem>>, %arg3: memref<1x128xf32, #tpu.memory_space<vmem>>, %arg4: memref<32x128xf32, #tpu.memory_space<vmem>>, %arg5: memref<32x128xf32, #tpu.memory_space<vmem>>, %arg6: memref<1x128xf32, #tpu.memory_space<vmem>>, %arg7: memref<32x1xf32, #tpu.memory_space<vmem>>, %arg8: memref<1x1xf32, #tpu.memory_space<vmem>>, %arg9: memref<8x1xf32, #tpu.memory_space<vmem>>) attributes {dimension_semantics = [], scalar_prefetch = 0 : i64, scratch_operands = 0 : i64, tpu.core_type = #tpu.core_type<tc>} {
    %c0 = arith.constant 0 : index
    %c0_0 = arith.constant 0 : index
    %0 = vector.load %arg0[%c0, %c0_0] : memref<64x16xf32, #tpu.memory_space<vmem>>, vector<64x16xf32>
    %c0_1 = arith.constant 0 : index
    %c0_2 = arith.constant 0 : index
    %1 = vector.load %arg1[%c0_1, %c0_2] : memref<16x128xf32, #tpu.memory_space<vmem>>, vector<16x128xf32>
    %cst = arith.constant dense<0.000000e+00> : vector<64x128xf32>
    %2 = tpu.matmul %0, %1, %cst {dimension_numbers = #tpu.dot_dimension_numbers<[1], [0], [0], [1], [0, 0, 1, 1], [], []>} : vector<64x16xf32>, vector<16x128xf32>, vector<64x128xf32> -> vector<64x128xf32>
    %c0_3 = arith.constant 0 : index
    %c0_4 = arith.constant 0 : index
    %3 = vector.load %arg3[%c0_3, %c0_4] : memref<1x128xf32, #tpu.memory_space<vmem>>, vector<1x128xf32>
    %4 = vector.broadcast %3 : vector<1x128xf32> to vector<64x128xf32>
    %5 = arith.addf %2, %4 : vector<64x128xf32>
    %c0_5 = arith.constant 0 : index
    %c0_6 = arith.constant 0 : index
    %6 = vector.load %arg6[%c0_5, %c0_6] : memref<1x128xf32, #tpu.memory_space<vmem>>, vector<1x128xf32>
    %7 = vector.shape_cast %6 : vector<1x128xf32> to vector<1x128xf32>
    %8 = vector.broadcast %7 : vector<1x128xf32> to vector<8x128xf32>
    %9 = tpu.iota {dimensions = array<i32: 1>} : vector<8x128xi32>
    %c64_i32 = arith.constant 64 : i32
    %10 = vector.broadcast %c64_i32 : i32 to vector<8x128xi32>
    %11 = arith.cmpi sge, %9, %10 : vector<8x128xi32>
    %c96_i32 = arith.constant 96 : i32
    %12 = vector.broadcast %c96_i32 : i32 to vector<8x128xi32>
    %13 = arith.cmpi slt, %9, %12 : vector<8x128xi32>
    %14 = arith.andi %11, %13 : vector<8x128xi1>
    %cst_7 = arith.constant 1.000000e+00 : f32
    %cst_8 = arith.constant 5.000000e-01 : f32
    %15 = vector.broadcast %cst_7 : f32 to vector<8x128xf32>
    %16 = vector.broadcast %cst_8 : f32 to vector<8x128xf32>
    %17 = arith.select %14, %15, %16 : vector<8x128xi1>, vector<8x128xf32>
    %cst_9 = arith.constant 0.000000e+00 : f32
    %cst_10 = arith.constant 5.000000e-01 : f32
    %18 = vector.broadcast %cst_9 : f32 to vector<8x128xf32>
    %19 = vector.broadcast %cst_10 : f32 to vector<8x128xf32>
    %20 = arith.select %14, %18, %19 : vector<8x128xi1>, vector<8x128xf32>
    %cst_11 = arith.constant 0.000000e+00 : f32
    %21 = vector.broadcast %cst_11 : f32 to vector<8x32xf32>
    %cst_12 = arith.constant 0.000000e+00 : f32
    %22 = vector.broadcast %cst_12 : f32 to vector<8x32xf32>
    %cst_13 = arith.constant 0.000000e+00 : f32
    %23 = vector.broadcast %cst_13 : f32 to vector<8x32xf32>
    %cst_14 = arith.constant 0.000000e+00 : f32
    %24 = vector.broadcast %cst_14 : f32 to vector<8x32xf32>
    %25 = vector.extract_strided_slice %5 {offsets = [0, 0], sizes = [8, 128], strides = [1, 1]} : vector<64x128xf32> to vector<8x128xf32>
    %c0_15 = arith.constant 0 : index
    %c0_16 = arith.constant 0 : index
    %26 = vector.load %arg2[%c0_15, %c0_16] : memref<32x128xf32, #tpu.memory_space<vmem>>, vector<32x128xf32>
    %cst_17 = arith.constant dense<0.000000e+00> : vector<8x128xf32>
    %27 = tpu.matmul %21, %26, %cst_17 {dimension_numbers = #tpu.dot_dimension_numbers<[1], [0], [0], [1], [0, 0, 1, 1], [], []>} : vector<8x32xf32>, vector<32x128xf32>, vector<8x128xf32> -> vector<8x128xf32>
    %28 = arith.addf %25, %27 : vector<8x128xf32>
    %29 = arith.mulf %28, %17 : vector<8x128xf32>
    %30 = math.tanh %29 : vector<8x128xf32>
    %31 = arith.mulf %30, %17 : vector<8x128xf32>
    %32 = arith.addf %31, %20 : vector<8x128xf32>
    %33 = vector.extract_strided_slice %32 {offsets = [0, 0], sizes = [8, 32], strides = [1, 1]} : vector<8x128xf32> to vector<8x32xf32>
    %34 = vector.extract_strided_slice %32 {offsets = [0, 32], sizes = [8, 32], strides = [1, 1]} : vector<8x128xf32> to vector<8x32xf32>
    %35 = vector.extract_strided_slice %32 {offsets = [0, 64], sizes = [8, 32], strides = [1, 1]} : vector<8x128xf32> to vector<8x32xf32>
    %36 = vector.extract_strided_slice %32 {offsets = [0, 96], sizes = [8, 32], strides = [1, 1]} : vector<8x128xf32> to vector<8x32xf32>
    %37 = arith.mulf %34, %23 : vector<8x32xf32>
    %38 = arith.mulf %33, %35 : vector<8x32xf32>
    %39 = arith.addf %37, %38 : vector<8x32xf32>
    %40 = math.tanh %39 : vector<8x32xf32>
    %41 = arith.mulf %36, %40 : vector<8x32xf32>
    %c0_18 = arith.constant 0 : index
    %c0_19 = arith.constant 0 : index
    %42 = vector.load %arg4[%c0_18, %c0_19] : memref<32x128xf32, #tpu.memory_space<vmem>>, vector<32x128xf32>
    %cst_20 = arith.constant dense<0.000000e+00> : vector<8x128xf32>
    %43 = tpu.matmul %41, %42, %cst_20 {dimension_numbers = #tpu.dot_dimension_numbers<[1], [0], [0], [1], [0, 0, 1, 1], [], []>} : vector<8x32xf32>, vector<32x128xf32>, vector<8x128xf32> -> vector<8x128xf32>
    %c0_21 = arith.constant 0 : index
    %c0_22 = arith.constant 0 : index
    %44 = vector.load %arg5[%c0_21, %c0_22] : memref<32x128xf32, #tpu.memory_space<vmem>>, vector<32x128xf32>
    %cst_23 = arith.constant dense<0.000000e+00> : vector<8x128xf32>
    %45 = tpu.matmul %22, %44, %cst_23 {dimension_numbers = #tpu.dot_dimension_numbers<[1], [0], [0], [1], [0, 0, 1, 1], [], []>} : vector<8x32xf32>, vector<32x128xf32>, vector<8x128xf32> -> vector<8x128xf32>
    %46 = arith.addf %43, %45 : vector<8x128xf32>
    %47 = arith.addf %46, %8 : vector<8x128xf32>
    %48 = arith.mulf %47, %17 : vector<8x128xf32>
    %49 = math.tanh %48 : vector<8x128xf32>
    %50 = arith.mulf %49, %17 : vector<8x128xf32>
    %51 = arith.addf %50, %20 : vector<8x128xf32>
    %52 = vector.extract_strided_slice %51 {offsets = [0, 0], sizes = [8, 32], strides = [1, 1]} : vector<8x128xf32> to vector<8x32xf32>
    %53 = vector.extract_strided_slice %51 {offsets = [0, 32], sizes = [8, 32], strides = [1, 1]} : vector<8x128xf32> to vector<8x32xf32>
    %54 = vector.extract_strided_slice %51 {offsets = [0, 64], sizes = [8, 32], strides = [1, 1]} : vector<8x128xf32> to vector<8x32xf32>
    %55 = vector.extract_strided_slice %51 {offsets = [0, 96], sizes = [8, 32], strides = [1, 1]} : vector<8x128xf32> to vector<8x32xf32>
    %56 = arith.mulf %53, %24 : vector<8x32xf32>
    %57 = arith.mulf %52, %54 : vector<8x32xf32>
    %58 = arith.addf %56, %57 : vector<8x32xf32>
    %59 = math.tanh %58 : vector<8x32xf32>
    %60 = arith.mulf %55, %59 : vector<8x32xf32>
    %61 = vector.extract_strided_slice %5 {offsets = [8, 0], sizes = [8, 128], strides = [1, 1]} : vector<64x128xf32> to vector<8x128xf32>
    %c0_24 = arith.constant 0 : index
    %c0_25 = arith.constant 0 : index
    %62 = vector.load %arg2[%c0_24, %c0_25] : memref<32x128xf32, #tpu.memory_space<vmem>>, vector<32x128xf32>
    %cst_26 = arith.constant dense<0.000000e+00> : vector<8x128xf32>
    %63 = tpu.matmul %41, %62, %cst_26 {dimension_numbers = #tpu.dot_dimension_numbers<[1], [0], [0], [1], [0, 0, 1, 1], [], []>} : vector<8x32xf32>, vector<32x128xf32>, vector<8x128xf32> -> vector<8x128xf32>
    %64 = arith.addf %61, %63 : vector<8x128xf32>
    %65 = arith.mulf %64, %17 : vector<8x128xf32>
    %66 = math.tanh %65 : vector<8x128xf32>
    %67 = arith.mulf %66, %17 : vector<8x128xf32>
    %68 = arith.addf %67, %20 : vector<8x128xf32>
    %69 = vector.extract_strided_slice %68 {offsets = [0, 0], sizes = [8, 32], strides = [1, 1]} : vector<8x128xf32> to vector<8x32xf32>
    %70 = vector.extract_strided_slice %68 {offsets = [0, 32], sizes = [8, 32], strides = [1, 1]} : vector<8x128xf32> to vector<8x32xf32>
    %71 = vector.extract_strided_slice %68 {offsets = [0, 64], sizes = [8, 32], strides = [1, 1]} : vector<8x128xf32> to vector<8x32xf32>
    %72 = vector.extract_strided_slice %68 {offsets = [0, 96], sizes = [8, 32], strides = [1, 1]} : vector<8x128xf32> to vector<8x32xf32>
    %73 = arith.mulf %70, %39 : vector<8x32xf32>
    %74 = arith.mulf %69, %71 : vector<8x32xf32>
    %75 = arith.addf %73, %74 : vector<8x32xf32>
    %76 = math.tanh %75 : vector<8x32xf32>
    %77 = arith.mulf %72, %76 : vector<8x32xf32>
    %c0_27 = arith.constant 0 : index
    %c0_28 = arith.constant 0 : index
    %78 = vector.load %arg4[%c0_27, %c0_28] : memref<32x128xf32, #tpu.memory_space<vmem>>, vector<32x128xf32>
    %cst_29 = arith.constant dense<0.000000e+00> : vector<8x128xf32>
    %79 = tpu.matmul %77, %78, %cst_29 {dimension_numbers = #tpu.dot_dimension_numbers<[1], [0], [0], [1], [0, 0, 1, 1], [], []>} : vector<8x32xf32>, vector<32x128xf32>, vector<8x128xf32> -> vector<8x128xf32>
    %c0_30 = arith.constant 0 : index
    %c0_31 = arith.constant 0 : index
    %80 = vector.load %arg5[%c0_30, %c0_31] : memref<32x128xf32, #tpu.memory_space<vmem>>, vector<32x128xf32>
    %cst_32 = arith.constant dense<0.000000e+00> : vector<8x128xf32>
    %81 = tpu.matmul %60, %80, %cst_32 {dimension_numbers = #tpu.dot_dimension_numbers<[1], [0], [0], [1], [0, 0, 1, 1], [], []>} : vector<8x32xf32>, vector<32x128xf32>, vector<8x128xf32> -> vector<8x128xf32>
    %82 = arith.addf %79, %81 : vector<8x128xf32>
    %83 = arith.addf %82, %8 : vector<8x128xf32>
    %84 = arith.mulf %83, %17 : vector<8x128xf32>
    %85 = math.tanh %84 : vector<8x128xf32>
    %86 = arith.mulf %85, %17 : vector<8x128xf32>
    %87 = arith.addf %86, %20 : vector<8x128xf32>
    %88 = vector.extract_strided_slice %87 {offsets = [0, 0], sizes = [8, 32], strides = [1, 1]} : vector<8x128xf32> to vector<8x32xf32>
    %89 = vector.extract_strided_slice %87 {offsets = [0, 32], sizes = [8, 32], strides = [1, 1]} : vector<8x128xf32> to vector<8x32xf32>
    %90 = vector.extract_strided_slice %87 {offsets = [0, 64], sizes = [8, 32], strides = [1, 1]} : vector<8x128xf32> to vector<8x32xf32>
    %91 = vector.extract_strided_slice %87 {offsets = [0, 96], sizes = [8, 32], strides = [1, 1]} : vector<8x128xf32> to vector<8x32xf32>
    %92 = arith.mulf %89, %58 : vector<8x32xf32>
    %93 = arith.mulf %88, %90 : vector<8x32xf32>
    %94 = arith.addf %92, %93 : vector<8x32xf32>
    %95 = math.tanh %94 : vector<8x32xf32>
    %96 = arith.mulf %91, %95 : vector<8x32xf32>
    %97 = vector.extract_strided_slice %5 {offsets = [16, 0], sizes = [8, 128], strides = [1, 1]} : vector<64x128xf32> to vector<8x128xf32>
    %c0_33 = arith.constant 0 : index
    %c0_34 = arith.constant 0 : index
    %98 = vector.load %arg2[%c0_33, %c0_34] : memref<32x128xf32, #tpu.memory_space<vmem>>, vector<32x128xf32>
    %cst_35 = arith.constant dense<0.000000e+00> : vector<8x128xf32>
    %99 = tpu.matmul %77, %98, %cst_35 {dimension_numbers = #tpu.dot_dimension_numbers<[1], [0], [0], [1], [0, 0, 1, 1], [], []>} : vector<8x32xf32>, vector<32x128xf32>, vector<8x128xf32> -> vector<8x128xf32>
    %100 = arith.addf %97, %99 : vector<8x128xf32>
    %101 = arith.mulf %100, %17 : vector<8x128xf32>
    %102 = math.tanh %101 : vector<8x128xf32>
    %103 = arith.mulf %102, %17 : vector<8x128xf32>
    %104 = arith.addf %103, %20 : vector<8x128xf32>
    %105 = vector.extract_strided_slice %104 {offsets = [0, 0], sizes = [8, 32], strides = [1, 1]} : vector<8x128xf32> to vector<8x32xf32>
    %106 = vector.extract_strided_slice %104 {offsets = [0, 32], sizes = [8, 32], strides = [1, 1]} : vector<8x128xf32> to vector<8x32xf32>
    %107 = vector.extract_strided_slice %104 {offsets = [0, 64], sizes = [8, 32], strides = [1, 1]} : vector<8x128xf32> to vector<8x32xf32>
    %108 = vector.extract_strided_slice %104 {offsets = [0, 96], sizes = [8, 32], strides = [1, 1]} : vector<8x128xf32> to vector<8x32xf32>
    %109 = arith.mulf %106, %75 : vector<8x32xf32>
    %110 = arith.mulf %105, %107 : vector<8x32xf32>
    %111 = arith.addf %109, %110 : vector<8x32xf32>
    %112 = math.tanh %111 : vector<8x32xf32>
    %113 = arith.mulf %108, %112 : vector<8x32xf32>
    %c0_36 = arith.constant 0 : index
    %c0_37 = arith.constant 0 : index
    %114 = vector.load %arg4[%c0_36, %c0_37] : memref<32x128xf32, #tpu.memory_space<vmem>>, vector<32x128xf32>
    %cst_38 = arith.constant dense<0.000000e+00> : vector<8x128xf32>
    %115 = tpu.matmul %113, %114, %cst_38 {dimension_numbers = #tpu.dot_dimension_numbers<[1], [0], [0], [1], [0, 0, 1, 1], [], []>} : vector<8x32xf32>, vector<32x128xf32>, vector<8x128xf32> -> vector<8x128xf32>
    %c0_39 = arith.constant 0 : index
    %c0_40 = arith.constant 0 : index
    %116 = vector.load %arg5[%c0_39, %c0_40] : memref<32x128xf32, #tpu.memory_space<vmem>>, vector<32x128xf32>
    %cst_41 = arith.constant dense<0.000000e+00> : vector<8x128xf32>
    %117 = tpu.matmul %96, %116, %cst_41 {dimension_numbers = #tpu.dot_dimension_numbers<[1], [0], [0], [1], [0, 0, 1, 1], [], []>} : vector<8x32xf32>, vector<32x128xf32>, vector<8x128xf32> -> vector<8x128xf32>
    %118 = arith.addf %115, %117 : vector<8x128xf32>
    %119 = arith.addf %118, %8 : vector<8x128xf32>
    %120 = arith.mulf %119, %17 : vector<8x128xf32>
    %121 = math.tanh %120 : vector<8x128xf32>
    %122 = arith.mulf %121, %17 : vector<8x128xf32>
    %123 = arith.addf %122, %20 : vector<8x128xf32>
    %124 = vector.extract_strided_slice %123 {offsets = [0, 0], sizes = [8, 32], strides = [1, 1]} : vector<8x128xf32> to vector<8x32xf32>
    %125 = vector.extract_strided_slice %123 {offsets = [0, 32], sizes = [8, 32], strides = [1, 1]} : vector<8x128xf32> to vector<8x32xf32>
    %126 = vector.extract_strided_slice %123 {offsets = [0, 64], sizes = [8, 32], strides = [1, 1]} : vector<8x128xf32> to vector<8x32xf32>
    %127 = vector.extract_strided_slice %123 {offsets = [0, 96], sizes = [8, 32], strides = [1, 1]} : vector<8x128xf32> to vector<8x32xf32>
    %128 = arith.mulf %125, %94 : vector<8x32xf32>
    %129 = arith.mulf %124, %126 : vector<8x32xf32>
    %130 = arith.addf %128, %129 : vector<8x32xf32>
    %131 = math.tanh %130 : vector<8x32xf32>
    %132 = arith.mulf %127, %131 : vector<8x32xf32>
    %133 = vector.extract_strided_slice %5 {offsets = [24, 0], sizes = [8, 128], strides = [1, 1]} : vector<64x128xf32> to vector<8x128xf32>
    %c0_42 = arith.constant 0 : index
    %c0_43 = arith.constant 0 : index
    %134 = vector.load %arg2[%c0_42, %c0_43] : memref<32x128xf32, #tpu.memory_space<vmem>>, vector<32x128xf32>
    %cst_44 = arith.constant dense<0.000000e+00> : vector<8x128xf32>
    %135 = tpu.matmul %113, %134, %cst_44 {dimension_numbers = #tpu.dot_dimension_numbers<[1], [0], [0], [1], [0, 0, 1, 1], [], []>} : vector<8x32xf32>, vector<32x128xf32>, vector<8x128xf32> -> vector<8x128xf32>
    %136 = arith.addf %133, %135 : vector<8x128xf32>
    %137 = arith.mulf %136, %17 : vector<8x128xf32>
    %138 = math.tanh %137 : vector<8x128xf32>
    %139 = arith.mulf %138, %17 : vector<8x128xf32>
    %140 = arith.addf %139, %20 : vector<8x128xf32>
    %141 = vector.extract_strided_slice %140 {offsets = [0, 0], sizes = [8, 32], strides = [1, 1]} : vector<8x128xf32> to vector<8x32xf32>
    %142 = vector.extract_strided_slice %140 {offsets = [0, 32], sizes = [8, 32], strides = [1, 1]} : vector<8x128xf32> to vector<8x32xf32>
    %143 = vector.extract_strided_slice %140 {offsets = [0, 64], sizes = [8, 32], strides = [1, 1]} : vector<8x128xf32> to vector<8x32xf32>
    %144 = vector.extract_strided_slice %140 {offsets = [0, 96], sizes = [8, 32], strides = [1, 1]} : vector<8x128xf32> to vector<8x32xf32>
    %145 = arith.mulf %142, %111 : vector<8x32xf32>
    %146 = arith.mulf %141, %143 : vector<8x32xf32>
    %147 = arith.addf %145, %146 : vector<8x32xf32>
    %148 = math.tanh %147 : vector<8x32xf32>
    %149 = arith.mulf %144, %148 : vector<8x32xf32>
    %c0_45 = arith.constant 0 : index
    %c0_46 = arith.constant 0 : index
    %150 = vector.load %arg4[%c0_45, %c0_46] : memref<32x128xf32, #tpu.memory_space<vmem>>, vector<32x128xf32>
    %cst_47 = arith.constant dense<0.000000e+00> : vector<8x128xf32>
    %151 = tpu.matmul %149, %150, %cst_47 {dimension_numbers = #tpu.dot_dimension_numbers<[1], [0], [0], [1], [0, 0, 1, 1], [], []>} : vector<8x32xf32>, vector<32x128xf32>, vector<8x128xf32> -> vector<8x128xf32>
    %c0_48 = arith.constant 0 : index
    %c0_49 = arith.constant 0 : index
    %152 = vector.load %arg5[%c0_48, %c0_49] : memref<32x128xf32, #tpu.memory_space<vmem>>, vector<32x128xf32>
    %cst_50 = arith.constant dense<0.000000e+00> : vector<8x128xf32>
    %153 = tpu.matmul %132, %152, %cst_50 {dimension_numbers = #tpu.dot_dimension_numbers<[1], [0], [0], [1], [0, 0, 1, 1], [], []>} : vector<8x32xf32>, vector<32x128xf32>, vector<8x128xf32> -> vector<8x128xf32>
    %154 = arith.addf %151, %153 : vector<8x128xf32>
    %155 = arith.addf %154, %8 : vector<8x128xf32>
    %156 = arith.mulf %155, %17 : vector<8x128xf32>
    %157 = math.tanh %156 : vector<8x128xf32>
    %158 = arith.mulf %157, %17 : vector<8x128xf32>
    %159 = arith.addf %158, %20 : vector<8x128xf32>
    %160 = vector.extract_strided_slice %159 {offsets = [0, 0], sizes = [8, 32], strides = [1, 1]} : vector<8x128xf32> to vector<8x32xf32>
    %161 = vector.extract_strided_slice %159 {offsets = [0, 32], sizes = [8, 32], strides = [1, 1]} : vector<8x128xf32> to vector<8x32xf32>
    %162 = vector.extract_strided_slice %159 {offsets = [0, 64], sizes = [8, 32], strides = [1, 1]} : vector<8x128xf32> to vector<8x32xf32>
    %163 = vector.extract_strided_slice %159 {offsets = [0, 96], sizes = [8, 32], strides = [1, 1]} : vector<8x128xf32> to vector<8x32xf32>
    %164 = arith.mulf %161, %130 : vector<8x32xf32>
    %165 = arith.mulf %160, %162 : vector<8x32xf32>
    %166 = arith.addf %164, %165 : vector<8x32xf32>
    %167 = math.tanh %166 : vector<8x32xf32>
    %168 = arith.mulf %163, %167 : vector<8x32xf32>
    %169 = vector.extract_strided_slice %5 {offsets = [32, 0], sizes = [8, 128], strides = [1, 1]} : vector<64x128xf32> to vector<8x128xf32>
    %c0_51 = arith.constant 0 : index
    %c0_52 = arith.constant 0 : index
    %170 = vector.load %arg2[%c0_51, %c0_52] : memref<32x128xf32, #tpu.memory_space<vmem>>, vector<32x128xf32>
    %cst_53 = arith.constant dense<0.000000e+00> : vector<8x128xf32>
    %171 = tpu.matmul %149, %170, %cst_53 {dimension_numbers = #tpu.dot_dimension_numbers<[1], [0], [0], [1], [0, 0, 1, 1], [], []>} : vector<8x32xf32>, vector<32x128xf32>, vector<8x128xf32> -> vector<8x128xf32>
    %172 = arith.addf %169, %171 : vector<8x128xf32>
    %173 = arith.mulf %172, %17 : vector<8x128xf32>
    %174 = math.tanh %173 : vector<8x128xf32>
    %175 = arith.mulf %174, %17 : vector<8x128xf32>
    %176 = arith.addf %175, %20 : vector<8x128xf32>
    %177 = vector.extract_strided_slice %176 {offsets = [0, 0], sizes = [8, 32], strides = [1, 1]} : vector<8x128xf32> to vector<8x32xf32>
    %178 = vector.extract_strided_slice %176 {offsets = [0, 32], sizes = [8, 32], strides = [1, 1]} : vector<8x128xf32> to vector<8x32xf32>
    %179 = vector.extract_strided_slice %176 {offsets = [0, 64], sizes = [8, 32], strides = [1, 1]} : vector<8x128xf32> to vector<8x32xf32>
    %180 = vector.extract_strided_slice %176 {offsets = [0, 96], sizes = [8, 32], strides = [1, 1]} : vector<8x128xf32> to vector<8x32xf32>
    %181 = arith.mulf %178, %147 : vector<8x32xf32>
    %182 = arith.mulf %177, %179 : vector<8x32xf32>
    %183 = arith.addf %181, %182 : vector<8x32xf32>
    %184 = math.tanh %183 : vector<8x32xf32>
    %185 = arith.mulf %180, %184 : vector<8x32xf32>
    %c0_54 = arith.constant 0 : index
    %c0_55 = arith.constant 0 : index
    %186 = vector.load %arg4[%c0_54, %c0_55] : memref<32x128xf32, #tpu.memory_space<vmem>>, vector<32x128xf32>
    %cst_56 = arith.constant dense<0.000000e+00> : vector<8x128xf32>
    %187 = tpu.matmul %185, %186, %cst_56 {dimension_numbers = #tpu.dot_dimension_numbers<[1], [0], [0], [1], [0, 0, 1, 1], [], []>} : vector<8x32xf32>, vector<32x128xf32>, vector<8x128xf32> -> vector<8x128xf32>
    %c0_57 = arith.constant 0 : index
    %c0_58 = arith.constant 0 : index
    %188 = vector.load %arg5[%c0_57, %c0_58] : memref<32x128xf32, #tpu.memory_space<vmem>>, vector<32x128xf32>
    %cst_59 = arith.constant dense<0.000000e+00> : vector<8x128xf32>
    %189 = tpu.matmul %168, %188, %cst_59 {dimension_numbers = #tpu.dot_dimension_numbers<[1], [0], [0], [1], [0, 0, 1, 1], [], []>} : vector<8x32xf32>, vector<32x128xf32>, vector<8x128xf32> -> vector<8x128xf32>
    %190 = arith.addf %187, %189 : vector<8x128xf32>
    %191 = arith.addf %190, %8 : vector<8x128xf32>
    %192 = arith.mulf %191, %17 : vector<8x128xf32>
    %193 = math.tanh %192 : vector<8x128xf32>
    %194 = arith.mulf %193, %17 : vector<8x128xf32>
    %195 = arith.addf %194, %20 : vector<8x128xf32>
    %196 = vector.extract_strided_slice %195 {offsets = [0, 0], sizes = [8, 32], strides = [1, 1]} : vector<8x128xf32> to vector<8x32xf32>
    %197 = vector.extract_strided_slice %195 {offsets = [0, 32], sizes = [8, 32], strides = [1, 1]} : vector<8x128xf32> to vector<8x32xf32>
    %198 = vector.extract_strided_slice %195 {offsets = [0, 64], sizes = [8, 32], strides = [1, 1]} : vector<8x128xf32> to vector<8x32xf32>
    %199 = vector.extract_strided_slice %195 {offsets = [0, 96], sizes = [8, 32], strides = [1, 1]} : vector<8x128xf32> to vector<8x32xf32>
    %200 = arith.mulf %197, %166 : vector<8x32xf32>
    %201 = arith.mulf %196, %198 : vector<8x32xf32>
    %202 = arith.addf %200, %201 : vector<8x32xf32>
    %203 = math.tanh %202 : vector<8x32xf32>
    %204 = arith.mulf %199, %203 : vector<8x32xf32>
    %205 = vector.extract_strided_slice %5 {offsets = [40, 0], sizes = [8, 128], strides = [1, 1]} : vector<64x128xf32> to vector<8x128xf32>
    %c0_60 = arith.constant 0 : index
    %c0_61 = arith.constant 0 : index
    %206 = vector.load %arg2[%c0_60, %c0_61] : memref<32x128xf32, #tpu.memory_space<vmem>>, vector<32x128xf32>
    %cst_62 = arith.constant dense<0.000000e+00> : vector<8x128xf32>
    %207 = tpu.matmul %185, %206, %cst_62 {dimension_numbers = #tpu.dot_dimension_numbers<[1], [0], [0], [1], [0, 0, 1, 1], [], []>} : vector<8x32xf32>, vector<32x128xf32>, vector<8x128xf32> -> vector<8x128xf32>
    %208 = arith.addf %205, %207 : vector<8x128xf32>
    %209 = arith.mulf %208, %17 : vector<8x128xf32>
    %210 = math.tanh %209 : vector<8x128xf32>
    %211 = arith.mulf %210, %17 : vector<8x128xf32>
    %212 = arith.addf %211, %20 : vector<8x128xf32>
    %213 = vector.extract_strided_slice %212 {offsets = [0, 0], sizes = [8, 32], strides = [1, 1]} : vector<8x128xf32> to vector<8x32xf32>
    %214 = vector.extract_strided_slice %212 {offsets = [0, 32], sizes = [8, 32], strides = [1, 1]} : vector<8x128xf32> to vector<8x32xf32>
    %215 = vector.extract_strided_slice %212 {offsets = [0, 64], sizes = [8, 32], strides = [1, 1]} : vector<8x128xf32> to vector<8x32xf32>
    %216 = vector.extract_strided_slice %212 {offsets = [0, 96], sizes = [8, 32], strides = [1, 1]} : vector<8x128xf32> to vector<8x32xf32>
    %217 = arith.mulf %214, %183 : vector<8x32xf32>
    %218 = arith.mulf %213, %215 : vector<8x32xf32>
    %219 = arith.addf %217, %218 : vector<8x32xf32>
    %220 = math.tanh %219 : vector<8x32xf32>
    %221 = arith.mulf %216, %220 : vector<8x32xf32>
    %c0_63 = arith.constant 0 : index
    %c0_64 = arith.constant 0 : index
    %222 = vector.load %arg4[%c0_63, %c0_64] : memref<32x128xf32, #tpu.memory_space<vmem>>, vector<32x128xf32>
    %cst_65 = arith.constant dense<0.000000e+00> : vector<8x128xf32>
    %223 = tpu.matmul %221, %222, %cst_65 {dimension_numbers = #tpu.dot_dimension_numbers<[1], [0], [0], [1], [0, 0, 1, 1], [], []>} : vector<8x32xf32>, vector<32x128xf32>, vector<8x128xf32> -> vector<8x128xf32>
    %c0_66 = arith.constant 0 : index
    %c0_67 = arith.constant 0 : index
    %224 = vector.load %arg5[%c0_66, %c0_67] : memref<32x128xf32, #tpu.memory_space<vmem>>, vector<32x128xf32>
    %cst_68 = arith.constant dense<0.000000e+00> : vector<8x128xf32>
    %225 = tpu.matmul %204, %224, %cst_68 {dimension_numbers = #tpu.dot_dimension_numbers<[1], [0], [0], [1], [0, 0, 1, 1], [], []>} : vector<8x32xf32>, vector<32x128xf32>, vector<8x128xf32> -> vector<8x128xf32>
    %226 = arith.addf %223, %225 : vector<8x128xf32>
    %227 = arith.addf %226, %8 : vector<8x128xf32>
    %228 = arith.mulf %227, %17 : vector<8x128xf32>
    %229 = math.tanh %228 : vector<8x128xf32>
    %230 = arith.mulf %229, %17 : vector<8x128xf32>
    %231 = arith.addf %230, %20 : vector<8x128xf32>
    %232 = vector.extract_strided_slice %231 {offsets = [0, 0], sizes = [8, 32], strides = [1, 1]} : vector<8x128xf32> to vector<8x32xf32>
    %233 = vector.extract_strided_slice %231 {offsets = [0, 32], sizes = [8, 32], strides = [1, 1]} : vector<8x128xf32> to vector<8x32xf32>
    %234 = vector.extract_strided_slice %231 {offsets = [0, 64], sizes = [8, 32], strides = [1, 1]} : vector<8x128xf32> to vector<8x32xf32>
    %235 = vector.extract_strided_slice %231 {offsets = [0, 96], sizes = [8, 32], strides = [1, 1]} : vector<8x128xf32> to vector<8x32xf32>
    %236 = arith.mulf %233, %202 : vector<8x32xf32>
    %237 = arith.mulf %232, %234 : vector<8x32xf32>
    %238 = arith.addf %236, %237 : vector<8x32xf32>
    %239 = math.tanh %238 : vector<8x32xf32>
    %240 = arith.mulf %235, %239 : vector<8x32xf32>
    %241 = vector.extract_strided_slice %5 {offsets = [48, 0], sizes = [8, 128], strides = [1, 1]} : vector<64x128xf32> to vector<8x128xf32>
    %c0_69 = arith.constant 0 : index
    %c0_70 = arith.constant 0 : index
    %242 = vector.load %arg2[%c0_69, %c0_70] : memref<32x128xf32, #tpu.memory_space<vmem>>, vector<32x128xf32>
    %cst_71 = arith.constant dense<0.000000e+00> : vector<8x128xf32>
    %243 = tpu.matmul %221, %242, %cst_71 {dimension_numbers = #tpu.dot_dimension_numbers<[1], [0], [0], [1], [0, 0, 1, 1], [], []>} : vector<8x32xf32>, vector<32x128xf32>, vector<8x128xf32> -> vector<8x128xf32>
    %244 = arith.addf %241, %243 : vector<8x128xf32>
    %245 = arith.mulf %244, %17 : vector<8x128xf32>
    %246 = math.tanh %245 : vector<8x128xf32>
    %247 = arith.mulf %246, %17 : vector<8x128xf32>
    %248 = arith.addf %247, %20 : vector<8x128xf32>
    %249 = vector.extract_strided_slice %248 {offsets = [0, 0], sizes = [8, 32], strides = [1, 1]} : vector<8x128xf32> to vector<8x32xf32>
    %250 = vector.extract_strided_slice %248 {offsets = [0, 32], sizes = [8, 32], strides = [1, 1]} : vector<8x128xf32> to vector<8x32xf32>
    %251 = vector.extract_strided_slice %248 {offsets = [0, 64], sizes = [8, 32], strides = [1, 1]} : vector<8x128xf32> to vector<8x32xf32>
    %252 = vector.extract_strided_slice %248 {offsets = [0, 96], sizes = [8, 32], strides = [1, 1]} : vector<8x128xf32> to vector<8x32xf32>
    %253 = arith.mulf %250, %219 : vector<8x32xf32>
    %254 = arith.mulf %249, %251 : vector<8x32xf32>
    %255 = arith.addf %253, %254 : vector<8x32xf32>
    %256 = math.tanh %255 : vector<8x32xf32>
    %257 = arith.mulf %252, %256 : vector<8x32xf32>
    %c0_72 = arith.constant 0 : index
    %c0_73 = arith.constant 0 : index
    %258 = vector.load %arg4[%c0_72, %c0_73] : memref<32x128xf32, #tpu.memory_space<vmem>>, vector<32x128xf32>
    %cst_74 = arith.constant dense<0.000000e+00> : vector<8x128xf32>
    %259 = tpu.matmul %257, %258, %cst_74 {dimension_numbers = #tpu.dot_dimension_numbers<[1], [0], [0], [1], [0, 0, 1, 1], [], []>} : vector<8x32xf32>, vector<32x128xf32>, vector<8x128xf32> -> vector<8x128xf32>
    %c0_75 = arith.constant 0 : index
    %c0_76 = arith.constant 0 : index
    %260 = vector.load %arg5[%c0_75, %c0_76] : memref<32x128xf32, #tpu.memory_space<vmem>>, vector<32x128xf32>
    %cst_77 = arith.constant dense<0.000000e+00> : vector<8x128xf32>
    %261 = tpu.matmul %240, %260, %cst_77 {dimension_numbers = #tpu.dot_dimension_numbers<[1], [0], [0], [1], [0, 0, 1, 1], [], []>} : vector<8x32xf32>, vector<32x128xf32>, vector<8x128xf32> -> vector<8x128xf32>
    %262 = arith.addf %259, %261 : vector<8x128xf32>
    %263 = arith.addf %262, %8 : vector<8x128xf32>
    %264 = arith.mulf %263, %17 : vector<8x128xf32>
    %265 = math.tanh %264 : vector<8x128xf32>
    %266 = arith.mulf %265, %17 : vector<8x128xf32>
    %267 = arith.addf %266, %20 : vector<8x128xf32>
    %268 = vector.extract_strided_slice %267 {offsets = [0, 0], sizes = [8, 32], strides = [1, 1]} : vector<8x128xf32> to vector<8x32xf32>
    %269 = vector.extract_strided_slice %267 {offsets = [0, 32], sizes = [8, 32], strides = [1, 1]} : vector<8x128xf32> to vector<8x32xf32>
    %270 = vector.extract_strided_slice %267 {offsets = [0, 64], sizes = [8, 32], strides = [1, 1]} : vector<8x128xf32> to vector<8x32xf32>
    %271 = vector.extract_strided_slice %267 {offsets = [0, 96], sizes = [8, 32], strides = [1, 1]} : vector<8x128xf32> to vector<8x32xf32>
    %272 = arith.mulf %269, %238 : vector<8x32xf32>
    %273 = arith.mulf %268, %270 : vector<8x32xf32>
    %274 = arith.addf %272, %273 : vector<8x32xf32>
    %275 = math.tanh %274 : vector<8x32xf32>
    %276 = arith.mulf %271, %275 : vector<8x32xf32>
    %277 = vector.extract_strided_slice %5 {offsets = [56, 0], sizes = [8, 128], strides = [1, 1]} : vector<64x128xf32> to vector<8x128xf32>
    %c0_78 = arith.constant 0 : index
    %c0_79 = arith.constant 0 : index
    %278 = vector.load %arg2[%c0_78, %c0_79] : memref<32x128xf32, #tpu.memory_space<vmem>>, vector<32x128xf32>
    %cst_80 = arith.constant dense<0.000000e+00> : vector<8x128xf32>
    %279 = tpu.matmul %257, %278, %cst_80 {dimension_numbers = #tpu.dot_dimension_numbers<[1], [0], [0], [1], [0, 0, 1, 1], [], []>} : vector<8x32xf32>, vector<32x128xf32>, vector<8x128xf32> -> vector<8x128xf32>
    %280 = arith.addf %277, %279 : vector<8x128xf32>
    %281 = arith.mulf %280, %17 : vector<8x128xf32>
    %282 = math.tanh %281 : vector<8x128xf32>
    %283 = arith.mulf %282, %17 : vector<8x128xf32>
    %284 = arith.addf %283, %20 : vector<8x128xf32>
    %285 = vector.extract_strided_slice %284 {offsets = [0, 0], sizes = [8, 32], strides = [1, 1]} : vector<8x128xf32> to vector<8x32xf32>
    %286 = vector.extract_strided_slice %284 {offsets = [0, 32], sizes = [8, 32], strides = [1, 1]} : vector<8x128xf32> to vector<8x32xf32>
    %287 = vector.extract_strided_slice %284 {offsets = [0, 64], sizes = [8, 32], strides = [1, 1]} : vector<8x128xf32> to vector<8x32xf32>
    %288 = vector.extract_strided_slice %284 {offsets = [0, 96], sizes = [8, 32], strides = [1, 1]} : vector<8x128xf32> to vector<8x32xf32>
    %289 = arith.mulf %286, %255 : vector<8x32xf32>
    %290 = arith.mulf %285, %287 : vector<8x32xf32>
    %291 = arith.addf %289, %290 : vector<8x32xf32>
    %292 = math.tanh %291 : vector<8x32xf32>
    %293 = arith.mulf %288, %292 : vector<8x32xf32>
    %c0_81 = arith.constant 0 : index
    %c0_82 = arith.constant 0 : index
    %294 = vector.load %arg4[%c0_81, %c0_82] : memref<32x128xf32, #tpu.memory_space<vmem>>, vector<32x128xf32>
    %cst_83 = arith.constant dense<0.000000e+00> : vector<8x128xf32>
    %295 = tpu.matmul %293, %294, %cst_83 {dimension_numbers = #tpu.dot_dimension_numbers<[1], [0], [0], [1], [0, 0, 1, 1], [], []>} : vector<8x32xf32>, vector<32x128xf32>, vector<8x128xf32> -> vector<8x128xf32>
    %c0_84 = arith.constant 0 : index
    %c0_85 = arith.constant 0 : index
    %296 = vector.load %arg5[%c0_84, %c0_85] : memref<32x128xf32, #tpu.memory_space<vmem>>, vector<32x128xf32>
    %cst_86 = arith.constant dense<0.000000e+00> : vector<8x128xf32>
    %297 = tpu.matmul %276, %296, %cst_86 {dimension_numbers = #tpu.dot_dimension_numbers<[1], [0], [0], [1], [0, 0, 1, 1], [], []>} : vector<8x32xf32>, vector<32x128xf32>, vector<8x128xf32> -> vector<8x128xf32>
    %298 = arith.addf %295, %297 : vector<8x128xf32>
    %299 = arith.addf %298, %8 : vector<8x128xf32>
    %300 = arith.mulf %299, %17 : vector<8x128xf32>
    %301 = math.tanh %300 : vector<8x128xf32>
    %302 = arith.mulf %301, %17 : vector<8x128xf32>
    %303 = arith.addf %302, %20 : vector<8x128xf32>
    %304 = vector.extract_strided_slice %303 {offsets = [0, 0], sizes = [8, 32], strides = [1, 1]} : vector<8x128xf32> to vector<8x32xf32>
    %305 = vector.extract_strided_slice %303 {offsets = [0, 32], sizes = [8, 32], strides = [1, 1]} : vector<8x128xf32> to vector<8x32xf32>
    %306 = vector.extract_strided_slice %303 {offsets = [0, 64], sizes = [8, 32], strides = [1, 1]} : vector<8x128xf32> to vector<8x32xf32>
    %307 = vector.extract_strided_slice %303 {offsets = [0, 96], sizes = [8, 32], strides = [1, 1]} : vector<8x128xf32> to vector<8x32xf32>
    %308 = arith.mulf %305, %274 : vector<8x32xf32>
    %309 = arith.mulf %304, %306 : vector<8x32xf32>
    %310 = arith.addf %308, %309 : vector<8x32xf32>
    %311 = math.tanh %310 : vector<8x32xf32>
    %312 = arith.mulf %307, %311 : vector<8x32xf32>
    %c0_87 = arith.constant 0 : index
    %c0_88 = arith.constant 0 : index
    %313 = vector.load %arg7[%c0_87, %c0_88] : memref<32x1xf32, #tpu.memory_space<vmem>>, vector<32x1xf32>
    %cst_89 = arith.constant dense<0.000000e+00> : vector<8x1xf32>
    %314 = tpu.matmul %312, %313, %cst_89 {dimension_numbers = #tpu.dot_dimension_numbers<[1], [0], [0], [1], [0, 0, 1, 1], [], []>} : vector<8x32xf32>, vector<32x1xf32>, vector<8x1xf32> -> vector<8x1xf32>
    %c0_90 = arith.constant 0 : index
    %c0_91 = arith.constant 0 : index
    %315 = vector.load %arg8[%c0_90, %c0_91] : memref<1x1xf32, #tpu.memory_space<vmem>>, vector<1x1xf32>
    %316 = vector.broadcast %315 : vector<1x1xf32> to vector<8x1xf32>
    %317 = arith.addf %314, %316 : vector<8x1xf32>
    %c0_92 = arith.constant 0 : index
    %c0_93 = arith.constant 0 : index
    %318 = vector.load %arg9[%c0_92, %c0_93] : memref<8x1xf32, #tpu.memory_space<vmem>>, vector<8x1xf32>
    tpu.vector_store %arg9[%c0_92, %c0_93], %317 {strides = array<i32>} : memref<8x1xf32, #tpu.memory_space<vmem>>, vector<8x1xf32>,
    return
  }
}

</mosaic_0001>

<llo_original>
// kernel: lstm_forward.1
$region0: #{lstm_forward.1}
  #allocation0 [shape = 'u32[]', space=smem, size = 0x4, offset = 0x4, fixed_abs, tag = 'smem constant byte address 0x4 - core index']
  #allocation1 [shape = 'u32[144,128]{1,0:T(1,128)}', space=vmem, size = 0x12000, scoped, tag = 'internal scratch']
  #allocation2 [shape = 'f32[1,1]{1,0:T(1,128)S(1)}', space=vmem, size = 0x200, scoped, tag = 'scoped memory for lstm_forward.1']
  %s0 = inlined_call_operand.vmem [shape: f32[64,16], index: 0, kind: input, shape index: {}]
  %s1 = inlined_call_operand.vmem [shape: f32[16,128], index: 1, kind: input, shape index: {}]
  %s2 = inlined_call_operand.vmem [shape: f32[32,128], index: 2, kind: input, shape index: {}]
  %s3 = inlined_call_operand.vmem [shape: f32[1,128], index: 3, kind: input, shape index: {}]
  %s4 = inlined_call_operand.vmem [shape: f32[32,128], index: 4, kind: input, shape index: {}]
  %s5 = inlined_call_operand.vmem [shape: f32[32,128], index: 5, kind: input, shape index: {}]
  %s6 = inlined_call_operand.vmem [shape: f32[1,128], index: 6, kind: input, shape index: {}]
  %s7 = inlined_call_operand.vmem [shape: f32[32,1], index: 7, kind: input, shape index: {}]
  %s8 = inlined_call_operand.<no memory space> [shape: f32[1,1], index: 8, kind: input, shape index: {}]
  %s9 = inlined_call_operand.vmem [shape: f32[8,1], index: 9, kind: output, shape index: {}]
  %s10 = sld [smem:[#allocation0]]
  $region46: #{lstm_forward.1} parent=0
    _
  %s12 = ssub.s32 1, %s10
  %s13 = scalar_select 0, %s12, %s10
  %v14 = vstv %s8
  %15 = vst [vmem:[#allocation2] sm:$0x1] %v14
  // Predicated region
  $region2: #{lstm_forward.1} parent=0 // pred_check
    _
  $region3: #{lstm_forward.1} parent=0 // pred_check_branch
    %17 = sbr.rel (0) target = $region5
  $region4: #{lstm_forward.1} parent=0 // pred_region
    _
  $region5: #{lstm_forward.1} parent=0 // pred_fallthru
    _
  // Predicated region
  $region6: #{lstm_forward.1} parent=0 // pred_check
    _
  $region7: #{lstm_forward.1} parent=0 // pred_check_branch
    %19 = sbr.rel (0) target = $region9
  $region8: #{lstm_forward.1} parent=0 // pred_region
    _
  $region9: #{lstm_forward.1} parent=0 // pred_fallthru
    _
  // Predicated region
  $region10: #{lstm_forward.1} parent=0 // pred_check
    _
  $region11: #{lstm_forward.1} parent=0 // pred_check_branch
    %21 = sbr.rel (0) target = $region13
  $region12: #{lstm_forward.1} parent=0 // pred_region
    _
  $region13: #{lstm_forward.1} parent=0 // pred_fallthru
    _
  // Predicated region
  $region14: #{lstm_forward.1} parent=0 // pred_check
    _
  $region15: #{lstm_forward.1} parent=0 // pred_check_branch
    %23 = sbr.rel (0) target = $region17
  $region16: #{lstm_forward.1} parent=0 // pred_region
    _
  $region17: #{lstm_forward.1} parent=0 // pred_fallthru
    _
  // Predicated region
  $region18: #{lstm_forward.1} parent=0 // pred_check
    _
  $region19: #{lstm_forward.1} parent=0 // pred_check_branch
    %25 = sbr.rel (0) target = $region21
  $region20: #{lstm_forward.1} parent=0 // pred_region
    _
  $region21: #{lstm_forward.1} parent=0 // pred_fallthru
    _
  // Predicated region
  $region22: #{lstm_forward.1} parent=0 // pred_check
    _
  $region23: #{lstm_forward.1} parent=0 // pred_check_branch
    %27 = sbr.rel (0) target = $region25
  $region24: #{lstm_forward.1} parent=0 // pred_region
    _
  $region25: #{lstm_forward.1} parent=0 // pred_fallthru
    _
  // Predicated region
  $region26: #{lstm_forward.1} parent=0 // pred_check
    _
  $region27: #{lstm_forward.1} parent=0 // pred_check_branch
    %29 = sbr.rel (0) target = $region29
  $region28: #{lstm_forward.1} parent=0 // pred_region
    _
  $region29: #{lstm_forward.1} parent=0 // pred_fallthru
    _
  // Predicated region
  $region30: #{lstm_forward.1} parent=0 // pred_check
    _
  $region31: #{lstm_forward.1} parent=0 // pred_check_branch
    %31 = sbr.rel (0) target = $region33
  $region32: #{lstm_forward.1} parent=0 // pred_region
    _
  $region33: #{lstm_forward.1} parent=0 // pred_fallthru
    _
  // Predicated region
  $region34: #{lstm_forward.1} parent=0 // pred_check
    _
  $region35: #{lstm_forward.1} parent=0 // pred_check_branch
    %33 = sbr.rel (0) target = $region37
  $region36: #{lstm_forward.1} parent=0 // pred_region
    _
  $region37: #{lstm_forward.1} parent=0 // pred_fallthru
    _
  %v34 = vld [vmem:[%s0] sm:$0xff]
  %v35 = vld [vmem:[%s0 + $0x8] sm:$0xff]
  %v36 = vld [vmem:[%s0 + $0x10] sm:$0xff]
  %v37 = vld [vmem:[%s0 + $0x18] sm:$0xff]
  %v38 = vld [vmem:[%s0 + $0x20] sm:$0xff]
  %v39 = vld [vmem:[%s0 + $0x28] sm:$0xff]
  %v40 = vld [vmem:[%s0 + $0x30] sm:$0xff]
  %v41 = vld [vmem:[%s0 + $0x38] sm:$0xff]
  %v42 = vld [vmem:[%s1] sm:$0xff]
  %v43 = vld [vmem:[%s1 + $0x8] sm:$0xff]
  %v44 = vld [vmem:[%s3] sm:$0x1]
  %v46 = vlaneseq
  %v47 = vshrl.u32 %v46, 7
  %v48 = vsub.s32 0, %v47
  %v49 = vrot.slane %v44, %v48
  %vm51 = vcmask 130048
  %v53 = vsel %vm51, %v34, 0
  %v56 = vsel %vm51, %v35, 0
  %v59 = vsel %vm51, %v36, 0
  %v62 = vsel %vm51, %v37, 0
  %v65 = vsel %vm51, %v38, 0
  %v68 = vsel %vm51, %v39, 0
  %v71 = vsel %vm51, %v40, 0
  %v74 = vsel %vm51, %v41, 0
  %76 = vmatprep.subr.mxu0 0.0
  %77 = vmatpush1.msra.mxu0 %v42
  %78 = vmatprep.subr.mxu0 0.0
  %79 = vmatpush1.msra.mxu0 %v43
  %80 = vmatprep.subr.mxu0 0.0
  %81 = vmatpush1.msra.mxu0 0.0
  %82 = vmatprep.subr.mxu0 0.0
  %83 = vmatpush1.msra.mxu0 0.0
  %84 = vmatprep.subr.mxu0 0.0
  %85 = vmatpush1.msra.mxu0 0.0
  %86 = vmatprep.subr.mxu0 0.0
  %87 = vmatpush1.msra.mxu0 0.0
  %88 = vmatprep.subr.mxu0 0.0
  %89 = vmatpush1.msra.mxu0 0.0
  %90 = vmatprep.subr.mxu0 0.0
  %91 = vmatpush1.msra.mxu0 0.0
  %92 = vmatprep.subr.mxu0 0.0
  %93 = vmatpush1.msra.mxu0 0.0
  %94 = vmatprep.subr.mxu0 0.0
  %95 = vmatpush1.msra.mxu0 0.0
  %96 = vmatprep.subr.mxu0 0.0
  %97 = vmatpush1.msra.mxu0 0.0
  %98 = vmatprep.subr.mxu0 0.0
  %99 = vmatpush1.msra.mxu0 0.0
  %100 = vmatprep.subr.mxu0 0.0
  %101 = vmatpush1.msra.mxu0 0.0
  %102 = vmatprep.subr.mxu0 0.0
  %103 = vmatpush1.msra.mxu0 0.0
  %104 = vmatprep.subr.mxu0 0.0
  %105 = vmatpush1.msra.mxu0 0.0
  %106 = vmatprep.subr.mxu0 0.0
  %107 = vmatpush1.msra.mxu0 0.0
  %108 = vmatprep.subr.mxu0 0.0
  %109 = vmatpush1.msra.mxu0 0.0
  %110 = vmatprep.subr.mxu0 0.0
  %111 = vmatpush1.msra.mxu0 0.0
  %112 = vmatprep.subr.mxu0 0.0
  %113 = vmatpush1.msra.mxu0 0.0
  %114 = vmatprep.subr.mxu0 0.0
  %115 = vmatpush1.msra.mxu0 0.0
  %116 = vmatprep.subr.mxu0 0.0
  %117 = vmatpush1.msra.mxu0 0.0
  %118 = vmatprep.subr.mxu0 0.0
  %119 = vmatpush1.msra.mxu0 0.0
  %120 = vmatprep.subr.mxu0 0.0
  %121 = vmatpush1.msra.mxu0 0.0
  %122 = vmatprep.subr.mxu0 0.0
  %123 = vmatpush1.msra.mxu0 0.0
  %124 = vmatprep.subr.mxu0 0.0
  %125 = vmatpush1.msra.mxu0 0.0
  %126 = vmatprep.subr.mxu0 0.0
  %127 = vmatpush1.msra.mxu0 0.0
  %128 = vmatprep.subr.mxu0 0.0
  %129 = vmatpush1.msra.mxu0 0.0
  %130 = vmatprep.subr.mxu0 0.0
  %131 = vmatpush1.msra.mxu0 0.0
  %132 = vmatprep.subr.mxu0 0.0
  %133 = vmatpush1.msra.mxu0 0.0
  %134 = vmatprep.subr.mxu0 0.0
  %135 = vmatpush1.msra.mxu0 0.0
  %136 = vmatprep.subr.mxu0 0.0
  %137 = vmatpush1.msra.mxu0 0.0
  %138 = vmatprep.subr.mxu0 0.0
  %139 = vmatpush1.msra.mxu0 0.0
  %140 = vmatprep.mubr.f32.mxu0 0.0
  %141 = vmatmul.mubr.f32.gmra.mrb[0].mxu0 %v53
  %v142 = vpop.f32.mrb[0].mxu0
  %v143 = vadd.f32 %v49, %v142
  %v144 = vpop.f32.mrb[0].mxu0
  %145 = vmatprep.mubr.f32.mxu0 0.0
  %146 = vmatmul.mubr.f32.gmra.mrb[0].mxu0 %v56
  %v147 = vpop.f32.mrb[0].mxu0
  %v148 = vadd.f32 %v49, %v147
  %v149 = vpop.f32.mrb[0].mxu0
  %150 = vmatprep.mubr.f32.mxu0 0.0
  %151 = vmatmul.mubr.f32.gmra.mrb[0].mxu0 %v59
  %v152 = vpop.f32.mrb[0].mxu0
  %v153 = vadd.f32 %v49, %v152
  %v154 = vpop.f32.mrb[0].mxu0
  %155 = vmatprep.mubr.f32.mxu0 0.0
  %156 = vmatmul.mubr.f32.gmra.mrb[0].mxu0 %v62
  %v157 = vpop.f32.mrb[0].mxu0
  %v158 = vadd.f32 %v49, %v157
  %v159 = vpop.f32.mrb[0].mxu0
  %160 = vmatprep.mubr.f32.mxu0 0.0
  %161 = vmatmul.mubr.f32.gmra.mrb[0].mxu0 %v65
  %v162 = vpop.f32.mrb[0].mxu0
  %v163 = vadd.f32 %v49, %v162
  %v164 = vpop.f32.mrb[0].mxu0
  %165 = vmatprep.mubr.f32.mxu0 0.0
  %166 = vmatmul.mubr.f32.gmra.mrb[0].mxu0 %v68
  %v167 = vpop.f32.mrb[0].mxu0
  %v168 = vadd.f32 %v49, %v167
  %v169 = vpop.f32.mrb[0].mxu0
  %170 = vmatprep.mubr.f32.mxu0 0.0
  %171 = vmatmul.mubr.f32.gmra.mrb[0].mxu0 %v71
  %v172 = vpop.f32.mrb[0].mxu0
  %v173 = vadd.f32 %v49, %v172
  %v174 = vpop.f32.mrb[0].mxu0
  %175 = vmatprep.mubr.f32.mxu0 0.0
  %176 = vmatmul.mubr.f32.gmra.mrb[0].mxu0 %v74
  %v177 = vpop.f32.mrb[0].mxu0
  %v178 = vadd.f32 %v49, %v177
  %v179 = vpop.f32.mrb[0].mxu0
  %180 = vdwg.mxu0
  %v181 = vld [vmem:[%s6] sm:$0x1]
  %v183 = vlaneseq
  %v184 = vshrl.u32 %v183, 7
  %v185 = vsub.s32 0, %v184
  %v186 = vrot.slane %v181, %v185
  %v188 = vlaneseq
  %v189 = vand.u32 %v188, 127
  %vm190 = vcmp.ge.s32.totalorder %v189, 64
  %vm191 = vcmp.lt.s32.totalorder %v189, 96
  %vm192 = vmand %vm190, %vm191
  %v193 = vsel %vm192, 1.0, 0.5
  %v194 = vsel %vm192, 0.0, 0.5
  %v195 = vld [vmem:[%s2] sm:$0xff]
  %v196 = vld [vmem:[%s2 + $0x8] sm:$0xff]
  %v197 = vld [vmem:[%s2 + $0x10] sm:$0xff]
  %v198 = vld [vmem:[%s2 + $0x18] sm:$0xff]
  %vm199 = vcmask 261120
  %v201 = vsel %vm199, 0.0, 0
  %203 = vmatprep.subr.mxu0 0.0
  %204 = vmatpush1.msra.mxu0 %v195
  %205 = vmatprep.subr.mxu0 0.0
  %206 = vmatpush1.msra.mxu0 %v196
  %207 = vmatprep.subr.mxu0 0.0
  %208 = vmatpush1.msra.mxu0 %v197
  %209 = vmatprep.subr.mxu0 0.0
  %210 = vmatpush1.msra.mxu0 %v198
  %211 = vmatprep.subr.mxu0 0.0
  %212 = vmatpush1.msra.mxu0 0.0
  %213 = vmatprep.subr.mxu0 0.0
  %214 = vmatpush1.msra.mxu0 0.0
  %215 = vmatprep.subr.mxu0 0.0
  %216 = vmatpush1.msra.mxu0 0.0
  %217 = vmatprep.subr.mxu0 0.0
  %218 = vmatpush1.msra.mxu0 0.0
  %219 = vmatprep.subr.mxu0 0.0
  %220 = vmatpush1.msra.mxu0 0.0
  %221 = vmatprep.subr.mxu0 0.0
  %222 = vmatpush1.msra.mxu0 0.0
  %223 = vmatprep.subr.mxu0 0.0
  %224 = vmatpush1.msra.mxu0 0.0
  %225 = vmatprep.subr.mxu0 0.0
  %226 = vmatpush1.msra.mxu0 0.0
  %227 = vmatprep.subr.mxu0 0.0
  %228 = vmatpush1.msra.mxu0 0.0
  %229 = vmatprep.subr.mxu0 0.0
  %230 = vmatpush1.msra.mxu0 0.0
  %231 = vmatprep.subr.mxu0 0.0
  %232 = vmatpush1.msra.mxu0 0.0
  %233 = vmatprep.subr.mxu0 0.0
  %234 = vmatpush1.msra.mxu0 0.0
  %235 = vmatprep.subr.mxu0 0.0
  %236 = vmatpush1.msra.mxu0 0.0
  %237 = vmatprep.subr.mxu0 0.0
  %238 = vmatpush1.msra.mxu0 0.0
  %239 = vmatprep.subr.mxu0 0.0
  %240 = vmatpush1.msra.mxu0 0.0
  %241 = vmatprep.subr.mxu0 0.0
  %242 = vmatpush1.msra.mxu0 0.0
  %243 = vmatprep.subr.mxu0 0.0
  %244 = vmatpush1.msra.mxu0 0.0
  %245 = vmatprep.subr.mxu0 0.0
  %246 = vmatpush1.msra.mxu0 0.0
  %247 = vmatprep.subr.mxu0 0.0
  %248 = vmatpush1.msra.mxu0 0.0
  %249 = vmatprep.subr.mxu0 0.0
  %250 = vmatpush1.msra.mxu0 0.0
  %251 = vmatprep.subr.mxu0 0.0
  %252 = vmatpush1.msra.mxu0 0.0
  %253 = vmatprep.subr.mxu0 0.0
  %254 = vmatpush1.msra.mxu0 0.0
  %255 = vmatprep.subr.mxu0 0.0
  %256 = vmatpush1.msra.mxu0 0.0
  %257 = vmatprep.subr.mxu0 0.0
  %258 = vmatpush1.msra.mxu0 0.0
  %259 = vmatprep.subr.mxu0 0.0
  %260 = vmatpush1.msra.mxu0 0.0
  %261 = vmatprep.subr.mxu0 0.0
  %262 = vmatpush1.msra.mxu0 0.0
  %263 = vmatprep.subr.mxu0 0.0
  %264 = vmatpush1.msra.mxu0 0.0
  %265 = vmatprep.subr.mxu0 0.0
  %266 = vmatpush1.msra.mxu0 0.0
  %267 = vmatprep.mubr.f32.mxu0 0.0
  %268 = vmatmul.mubr.f32.gmra.mrb[0].mxu0 %v201
  %v269 = vpop.f32.mrb[0].mxu0
  %v270 = vadd.f32 0.0, %v269
  %v271 = vpop.f32.mrb[0].mxu0
  %272 = vdwg.mxu0
  %v273 = vadd.f32 %v143, %v270
  %v274 = vmul.f32 %v273, %v193
  %v275 = vtanh.pop %v274
  %v276 = vmul.f32 %v275, %v193
  %v277 = vadd.f32 %v276, %v194
  %v278 = vmul.f32 %v277, 0.0
  %280 = vrot.lane.b32.xlu0 %v277, 64
  %v281 = vpop.permute.xlu0 %280
  %v283 = vmul.f32 %v277, %v281
  %285 = vrot.lane.b32.xlu0 %v283, 32
  %v286 = vpop.permute.xlu0 %285
  %v288 = vadd.f32 %v278, %v286
  %v289 = vtanh.pop %v288
  %291 = vrot.lane.b32.xlu0 %v289, 64
  %v292 = vpop.permute.xlu0 %291
  %v294 = vmul.f32 %v277, %v292
  %v295 = vld [vmem:[%s4] sm:$0xff]
  %v296 = vld [vmem:[%s4 + $0x8] sm:$0xff]
  %v297 = vld [vmem:[%s4 + $0x10] sm:$0xff]
  %v298 = vld [vmem:[%s4 + $0x18] sm:$0xff]
  %v299 = vld [vmem:[%s5] sm:$0xff]
  %v300 = vld [vmem:[%s5 + $0x8] sm:$0xff]
  %v301 = vld [vmem:[%s5 + $0x10] sm:$0xff]
  %v302 = vld [vmem:[%s5 + $0x18] sm:$0xff]
  %303 = vmatprep.subr.mxu0 0.0
  %304 = vmatpush1.msra.mxu0 %v299
  %305 = vmatprep.subr.mxu0 0.0
  %306 = vmatpush1.msra.mxu0 %v300
  %307 = vmatprep.subr.mxu0 0.0
  %308 = vmatpush1.msra.mxu0 %v301
  %309 = vmatprep.subr.mxu0 0.0
  %310 = vmatpush1.msra.mxu0 %v302
  %311 = vmatprep.subr.mxu0 0.0
  %312 = vmatpush1.msra.mxu0 0.0
  %313 = vmatprep.subr.mxu0 0.0
  %314 = vmatpush1.msra.mxu0 0.0
  %315 = vmatprep.subr.mxu0 0.0
  %316 = vmatpush1.msra.mxu0 0.0
  %317 = vmatprep.subr.mxu0 0.0
  %318 = vmatpush1.msra.mxu0 0.0
  %319 = vmatprep.subr.mxu0 0.0
  %320 = vmatpush1.msra.mxu0 0.0
  %321 = vmatprep.subr.mxu0 0.0
  %322 = vmatpush1.msra.mxu0 0.0
  %323 = vmatprep.subr.mxu0 0.0
  %324 = vmatpush1.msra.mxu0 0.0
  %325 = vmatprep.subr.mxu0 0.0
  %326 = vmatpush1.msra.mxu0 0.0
  %327 = vmatprep.subr.mxu0 0.0
  %328 = vmatpush1.msra.mxu0 0.0
  %329 = vmatprep.subr.mxu0 0.0
  %330 = vmatpush1.msra.mxu0 0.0
  %331 = vmatprep.subr.mxu0 0.0
  %332 = vmatpush1.msra.mxu0 0.0
  %333 = vmatprep.subr.mxu0 0.0
  %334 = vmatpush1.msra.mxu0 0.0
  %335 = vmatprep.subr.mxu0 0.0
  %336 = vmatpush1.msra.mxu0 0.0
  %337 = vmatprep.subr.mxu0 0.0
  %338 = vmatpush1.msra.mxu0 0.0
  %339 = vmatprep.subr.mxu0 0.0
  %340 = vmatpush1.msra.mxu0 0.0
  %341 = vmatprep.subr.mxu0 0.0
  %342 = vmatpush1.msra.mxu0 0.0
  %343 = vmatprep.subr.mxu0 0.0
  %344 = vmatpush1.msra.mxu0 0.0
  %345 = vmatprep.subr.mxu0 0.0
  %346 = vmatpush1.msra.mxu0 0.0
  %347 = vmatprep.subr.mxu0 0.0
  %348 = vmatpush1.msra.mxu0 0.0
  %349 = vmatprep.subr.mxu0 0.0
  %350 = vmatpush1.msra.mxu0 0.0
  %351 = vmatprep.subr.mxu0 0.0
  %352 = vmatpush1.msra.mxu0 0.0
  %353 = vmatprep.subr.mxu0 0.0
  %354 = vmatpush1.msra.mxu0 0.0
  %355 = vmatprep.subr.mxu0 0.0
  %356 = vmatpush1.msra.mxu0 0.0
  %357 = vmatprep.subr.mxu0 0.0
  %358 = vmatpush1.msra.mxu0 0.0
  %359 = vmatprep.subr.mxu0 0.0
  %360 = vmatpush1.msra.mxu0 0.0
  %361 = vmatprep.subr.mxu0 0.0
  %362 = vmatpush1.msra.mxu0 0.0
  %363 = vmatprep.subr.mxu0 0.0
  %364 = vmatpush1.msra.mxu0 0.0
  %365 = vmatprep.subr.mxu0 0.0
  %366 = vmatpush1.msra.mxu0 0.0
  %367 = vmatprep.mubr.f32.mxu0 0.0
  %368 = vmatmul.mubr.f32.gmra.mrb[0].mxu0 %v201
  %v369 = vpop.f32.mrb[0].mxu0
  %v370 = vadd.f32 0.0, %v369
  %v371 = vpop.f32.mrb[0].mxu0
  %372 = vdwg.mxu0
  %374 = vrot.lane.b32.xlu0 %v294, 32
  %v375 = vpop.permute.xlu0 %374
  %v376 = vsel %vm199, %v375, 0
  %378 = vmatprep.subr.mxu0 0.0
  %379 = vmatpush1.msra.mxu0 %v295
  %380 = vmatprep.subr.mxu0 0.0
  %381 = vmatpush1.msra.mxu0 %v296
  %382 = vmatprep.subr.mxu0 0.0
  %383 = vmatpush1.msra.mxu0 %v297
  %384 = vmatprep.subr.mxu0 0.0
  %385 = vmatpush1.msra.mxu0 %v298
  %386 = vmatprep.subr.mxu0 0.0
  %387 = vmatpush1.msra.mxu0 0.0
  %388 = vmatprep.subr.mxu0 0.0
  %389 = vmatpush1.msra.mxu0 0.0
  %390 = vmatprep.subr.mxu0 0.0
  %391 = vmatpush1.msra.mxu0 0.0
  %392 = vmatprep.subr.mxu0 0.0
  %393 = vmatpush1.msra.mxu0 0.0
  %394 = vmatprep.subr.mxu0 0.0
  %395 = vmatpush1.msra.mxu0 0.0
  %396 = vmatprep.subr.mxu0 0.0
  %397 = vmatpush1.msra.mxu0 0.0
  %398 = vmatprep.subr.mxu0 0.0
  %399 = vmatpush1.msra.mxu0 0.0
  %400 = vmatprep.subr.mxu0 0.0
  %401 = vmatpush1.msra.mxu0 0.0
  %402 = vmatprep.subr.mxu0 0.0
  %403 = vmatpush1.msra.mxu0 0.0
  %404 = vmatprep.subr.mxu0 0.0
  %405 = vmatpush1.msra.mxu0 0.0
  %406 = vmatprep.subr.mxu0 0.0
  %407 = vmatpush1.msra.mxu0 0.0
  %408 = vmatprep.subr.mxu0 0.0
  %409 = vmatpush1.msra.mxu0 0.0
  %410 = vmatprep.subr.mxu0 0.0
  %411 = vmatpush1.msra.mxu0 0.0
  %412 = vmatprep.subr.mxu0 0.0
  %413 = vmatpush1.msra.mxu0 0.0
  %414 = vmatprep.subr.mxu0 0.0
  %415 = vmatpush1.msra.mxu0 0.0
  %416 = vmatprep.subr.mxu0 0.0
  %417 = vmatpush1.msra.mxu0 0.0
  %418 = vmatprep.subr.mxu0 0.0
  %419 = vmatpush1.msra.mxu0 0.0
  %420 = vmatprep.subr.mxu0 0.0
  %421 = vmatpush1.msra.mxu0 0.0
  %422 = vmatprep.subr.mxu0 0.0
  %423 = vmatpush1.msra.mxu0 0.0
  %424 = vmatprep.subr.mxu0 0.0
  %425 = vmatpush1.msra.mxu0 0.0
  %426 = vmatprep.subr.mxu0 0.0
  %427 = vmatpush1.msra.mxu0 0.0
  %428 = vmatprep.subr.mxu0 0.0
  %429 = vmatpush1.msra.mxu0 0.0
  %430 = vmatprep.subr.mxu0 0.0
  %431 = vmatpush1.msra.mxu0 0.0
  %432 = vmatprep.subr.mxu0 0.0
  %433 = vmatpush1.msra.mxu0 0.0
  %434 = vmatprep.subr.mxu0 0.0
  %435 = vmatpush1.msra.mxu0 0.0
  %436 = vmatprep.subr.mxu0 0.0
  %437 = vmatpush1.msra.mxu0 0.0
  %438 = vmatprep.subr.mxu0 0.0
  %439 = vmatpush1.msra.mxu0 0.0
  %440 = vmatprep.subr.mxu0 0.0
  %441 = vmatpush1.msra.mxu0 0.0
  %442 = vmatprep.mubr.f32.mxu0 0.0
  %443 = vmatmul.mubr.f32.gmra.mrb[0].mxu0 %v376
  %v444 = vpop.f32.mrb[0].mxu0
  %v445 = vadd.f32 %v370, %v444
  %v446 = vpop.f32.mrb[0].mxu0
  %447 = vdwg.mxu0
  %v448 = vadd.f32 %v445, %v186
  %v449 = vmul.f32 %v448, %v193
  %v450 = vtanh.pop %v449
  %v451 = vmul.f32 %v450, %v193
  %v452 = vadd.f32 %v451, %v194
  %v453 = vmul.f32 %v452, 0.0
  %455 = vrot.lane.b32.xlu0 %v452, 64
  %v456 = vpop.permute.xlu0 %455
  %v458 = vmul.f32 %v452, %v456
  %460 = vrot.lane.b32.xlu0 %v458, 32
  %v461 = vpop.permute.xlu0 %460
  %v463 = vadd.f32 %v453, %v461
  %v464 = vtanh.pop %v463
  %466 = vrot.lane.b32.xlu0 %v464, 64
  %v467 = vpop.permute.xlu0 %466
  %v469 = vmul.f32 %v452, %v467
  %470 = vmatprep.subr.mxu0 0.0
  %471 = vmatpush1.msra.mxu0 %v195
  %472 = vmatprep.subr.mxu0 0.0
  %473 = vmatpush1.msra.mxu0 %v196
  %474 = vmatprep.subr.mxu0 0.0
  %475 = vmatpush1.msra.mxu0 %v197
  %476 = vmatprep.subr.mxu0 0.0
  %477 = vmatpush1.msra.mxu0 %v198
  %478 = vmatprep.subr.mxu0 0.0
  %479 = vmatpush1.msra.mxu0 0.0
  %480 = vmatprep.subr.mxu0 0.0
  %481 = vmatpush1.msra.mxu0 0.0
  %482 = vmatprep.subr.mxu0 0.0
  %483 = vmatpush1.msra.mxu0 0.0
  %484 = vmatprep.subr.mxu0 0.0
  %485 = vmatpush1.msra.mxu0 0.0
  %486 = vmatprep.subr.mxu0 0.0
  %487 = vmatpush1.msra.mxu0 0.0
  %488 = vmatprep.subr.mxu0 0.0
  %489 = vmatpush1.msra.mxu0 0.0
  %490 = vmatprep.subr.mxu0 0.0
  %491 = vmatpush1.msra.mxu0 0.0
  %492 = vmatprep.subr.mxu0 0.0
  %493 = vmatpush1.msra.mxu0 0.0
  %494 = vmatprep.subr.mxu0 0.0
  %495 = vmatpush1.msra.mxu0 0.0
  %496 = vmatprep.subr.mxu0 0.0
  %497 = vmatpush1.msra.mxu0 0.0
  %498 = vmatprep.subr.mxu0 0.0
  %499 = vmatpush1.msra.mxu0 0.0
  %500 = vmatprep.subr.mxu0 0.0
  %501 = vmatpush1.msra.mxu0 0.0
  %502 = vmatprep.subr.mxu0 0.0
  %503 = vmatpush1.msra.mxu0 0.0
  %504 = vmatprep.subr.mxu0 0.0
  %505 = vmatpush1.msra.mxu0 0.0
  %506 = vmatprep.subr.mxu0 0.0
  %507 = vmatpush1.msra.mxu0 0.0
  %508 = vmatprep.subr.mxu0 0.0
  %509 = vmatpush1.msra.mxu0 0.0
  %510 = vmatprep.subr.mxu0 0.0
  %511 = vmatpush1.msra.mxu0 0.0
  %512 = vmatprep.subr.mxu0 0.0
  %513 = vmatpush1.msra.mxu0 0.0
  %514 = vmatprep.subr.mxu0 0.0
  %515 = vmatpush1.msra.mxu0 0.0
  %516 = vmatprep.subr.mxu0 0.0
  %517 = vmatpush1.msra.mxu0 0.0
  %518 = vmatprep.subr.mxu0 0.0
  %519 = vmatpush1.msra.mxu0 0.0
  %520 = vmatprep.subr.mxu0 0.0
  %521 = vmatpush1.msra.mxu0 0.0
  %522 = vmatprep.subr.mxu0 0.0
  %523 = vmatpush1.msra.mxu0 0.0
  %524 = vmatprep.subr.mxu0 0.0
  %525 = vmatpush1.msra.mxu0 0.0
  %526 = vmatprep.subr.mxu0 0.0
  %527 = vmatpush1.msra.mxu0 0.0
  %528 = vmatprep.subr.mxu0 0.0
  %529 = vmatpush1.msra.mxu0 0.0
  %530 = vmatprep.subr.mxu0 0.0
  %531 = vmatpush1.msra.mxu0 0.0
  %532 = vmatprep.subr.mxu0 0.0
  %533 = vmatpush1.msra.mxu0 0.0
  %534 = vmatprep.mubr.f32.mxu0 0.0
  %535 = vmatmul.mubr.f32.gmra.mrb[0].mxu0 %v376
  %v536 = vpop.f32.mrb[0].mxu0
  %v537 = vadd.f32 0.0, %v536
  %v538 = vpop.f32.mrb[0].mxu0
  %539 = vdwg.mxu0
  %v540 = vadd.f32 %v148, %v537
  %v541 = vmul.f32 %v540, %v193
  %v542 = vtanh.pop %v541
  %v543 = vmul.f32 %v542, %v193
  %v544 = vadd.f32 %v543, %v194
  %v545 = vmul.f32 %v544, %v288
  %547 = vrot.lane.b32.xlu0 %v544, 64
  %v548 = vpop.permute.xlu0 %547
  %v550 = vmul.f32 %v544, %v548
  %552 = vrot.lane.b32.xlu0 %v550, 32
  %v553 = vpop.permute.xlu0 %552
  %v555 = vadd.f32 %v545, %v553
  %v556 = vtanh.pop %v555
  %558 = vrot.lane.b32.xlu0 %v556, 64
  %v559 = vpop.permute.xlu0 %558
  %v561 = vmul.f32 %v544, %v559
  %563 = vrot.lane.b32.xlu0 %v469, 32
  %v564 = vpop.permute.xlu0 %563
  %v565 = vsel %vm199, %v564, 0
  %567 = vmatprep.subr.mxu0 0.0
  %568 = vmatpush1.msra.mxu0 %v299
  %569 = vmatprep.subr.mxu0 0.0
  %570 = vmatpush1.msra.mxu0 %v300
  %571 = vmatprep.subr.mxu0 0.0
  %572 = vmatpush1.msra.mxu0 %v301
  %573 = vmatprep.subr.mxu0 0.0
  %574 = vmatpush1.msra.mxu0 %v302
  %575 = vmatprep.subr.mxu0 0.0
  %576 = vmatpush1.msra.mxu0 0.0
  %577 = vmatprep.subr.mxu0 0.0
  %578 = vmatpush1.msra.mxu0 0.0
  %579 = vmatprep.subr.mxu0 0.0
  %580 = vmatpush1.msra.mxu0 0.0
  %581 = vmatprep.subr.mxu0 0.0
  %582 = vmatpush1.msra.mxu0 0.0
  %583 = vmatprep.subr.mxu0 0.0
  %584 = vmatpush1.msra.mxu0 0.0
  %585 = vmatprep.subr.mxu0 0.0
  %586 = vmatpush1.msra.mxu0 0.0
  %587 = vmatprep.subr.mxu0 0.0
  %588 = vmatpush1.msra.mxu0 0.0
  %589 = vmatprep.subr.mxu0 0.0
  %590 = vmatpush1.msra.mxu0 0.0
  %591 = vmatprep.subr.mxu0 0.0
  %592 = vmatpush1.msra.mxu0 0.0
  %593 = vmatprep.subr.mxu0 0.0
  %594 = vmatpush1.msra.mxu0 0.0
  %595 = vmatprep.subr.mxu0 0.0
  %596 = vmatpush1.msra.mxu0 0.0
  %597 = vmatprep.subr.mxu0 0.0
  %598 = vmatpush1.msra.mxu0 0.0
  %599 = vmatprep.subr.mxu0 0.0
  %600 = vmatpush1.msra.mxu0 0.0
  %601 = vmatprep.subr.mxu0 0.0
  %602 = vmatpush1.msra.mxu0 0.0
  %603 = vmatprep.subr.mxu0 0.0
  %604 = vmatpush1.msra.mxu0 0.0
  %605 = vmatprep.subr.mxu0 0.0
  %606 = vmatpush1.msra.mxu0 0.0
  %607 = vmatprep.subr.mxu0 0.0
  %608 = vmatpush1.msra.mxu0 0.0
  %609 = vmatprep.subr.mxu0 0.0
  %610 = vmatpush1.msra.mxu0 0.0
  %611 = vmatprep.subr.mxu0 0.0
  %612 = vmatpush1.msra.mxu0 0.0
  %613 = vmatprep.subr.mxu0 0.0
  %614 = vmatpush1.msra.mxu0 0.0
  %615 = vmatprep.subr.mxu0 0.0
  %616 = vmatpush1.msra.mxu0 0.0
  %617 = vmatprep.subr.mxu0 0.0
  %618 = vmatpush1.msra.mxu0 0.0
  %619 = vmatprep.subr.mxu0 0.0
  %620 = vmatpush1.msra.mxu0 0.0
  %621 = vmatprep.subr.mxu0 0.0
  %622 = vmatpush1.msra.mxu0 0.0
  %623 = vmatprep.subr.mxu0 0.0
  %624 = vmatpush1.msra.mxu0 0.0
  %625 = vmatprep.subr.mxu0 0.0
  %626 = vmatpush1.msra.mxu0 0.0
  %627 = vmatprep.subr.mxu0 0.0
  %628 = vmatpush1.msra.mxu0 0.0
  %629 = vmatprep.subr.mxu0 0.0
  %630 = vmatpush1.msra.mxu0 0.0
  %631 = vmatprep.mubr.f32.mxu0 0.0
  %632 = vmatmul.mubr.f32.gmra.mrb[0].mxu0 %v565
  %v633 = vpop.f32.mrb[0].mxu0
  %v634 = vadd.f32 0.0, %v633
  %v635 = vpop.f32.mrb[0].mxu0
  %636 = vdwg.mxu0
  %638 = vrot.lane.b32.xlu0 %v561, 32
  %v639 = vpop.permute.xlu0 %638
  %v640 = vsel %vm199, %v639, 0
  %642 = vmatprep.subr.mxu0 0.0
  %643 = vmatpush1.msra.mxu0 %v295
  %644 = vmatprep.subr.mxu0 0.0
  %645 = vmatpush1.msra.mxu0 %v296
  %646 = vmatprep.subr.mxu0 0.0
  %647 = vmatpush1.msra.mxu0 %v297
  %648 = vmatprep.subr.mxu0 0.0
  %649 = vmatpush1.msra.mxu0 %v298
  %650 = vmatprep.subr.mxu0 0.0
  %651 = vmatpush1.msra.mxu0 0.0
  %652 = vmatprep.subr.mxu0 0.0
  %653 = vmatpush1.msra.mxu0 0.0
  %654 = vmatprep.subr.mxu0 0.0
  %655 = vmatpush1.msra.mxu0 0.0
  %656 = vmatprep.subr.mxu0 0.0
  %657 = vmatpush1.msra.mxu0 0.0
  %658 = vmatprep.subr.mxu0 0.0
  %659 = vmatpush1.msra.mxu0 0.0
  %660 = vmatprep.subr.mxu0 0.0
  %661 = vmatpush1.msra.mxu0 0.0
  %662 = vmatprep.subr.mxu0 0.0
  %663 = vmatpush1.msra.mxu0 0.0
  %664 = vmatprep.subr.mxu0 0.0
  %665 = vmatpush1.msra.mxu0 0.0
  %666 = vmatprep.subr.mxu0 0.0
  %667 = vmatpush1.msra.mxu0 0.0
  %668 = vmatprep.subr.mxu0 0.0
  %669 = vmatpush1.msra.mxu0 0.0
  %670 = vmatprep.subr.mxu0 0.0
  %671 = vmatpush1.msra.mxu0 0.0
  %672 = vmatprep.subr.mxu0 0.0
  %673 = vmatpush1.msra.mxu0 0.0
  %674 = vmatprep.subr.mxu0 0.0
  %675 = vmatpush1.msra.mxu0 0.0
  %676 = vmatprep.subr.mxu0 0.0
  %677 = vmatpush1.msra.mxu0 0.0
  %678 = vmatprep.subr.mxu0 0.0
  %679 = vmatpush1.msra.mxu0 0.0
  %680 = vmatprep.subr.mxu0 0.0
  %681 = vmatpush1.msra.mxu0 0.0
  %682 = vmatprep.subr.mxu0 0.0
  %683 = vmatpush1.msra.mxu0 0.0
  %684 = vmatprep.subr.mxu0 0.0
  %685 = vmatpush1.msra.mxu0 0.0
  %686 = vmatprep.subr.mxu0 0.0
  %687 = vmatpush1.msra.mxu0 0.0
  %688 = vmatprep.subr.mxu0 0.0
  %689 = vmatpush1.msra.mxu0 0.0
  %690 = vmatprep.subr.mxu0 0.0
  %691 = vmatpush1.msra.mxu0 0.0
  %692 = vmatprep.subr.mxu0 0.0
  %693 = vmatpush1.msra.mxu0 0.0
  %694 = vmatprep.subr.mxu0 0.0
  %695 = vmatpush1.msra.mxu0 0.0
  %696 = vmatprep.subr.mxu0 0.0
  %697 = vmatpush1.msra.mxu0 0.0
  %698 = vmatprep.subr.mxu0 0.0
  %699 = vmatpush1.msra.mxu0 0.0
  %700 = vmatprep.subr.mxu0 0.0
  %701 = vmatpush1.msra.mxu0 0.0
  %702 = vmatprep.subr.mxu0 0.0
  %703 = vmatpush1.msra.mxu0 0.0
  %704 = vmatprep.subr.mxu0 0.0
  %705 = vmatpush1.msra.mxu0 0.0
  %706 = vmatprep.mubr.f32.mxu0 0.0
  %707 = vmatmul.mubr.f32.gmra.mrb[0].mxu0 %v640
  %v708 = vpop.f32.mrb[0].mxu0
  %v709 = vadd.f32 %v634, %v708
  %v710 = vpop.f32.mrb[0].mxu0
  %711 = vdwg.mxu0
  %v712 = vadd.f32 %v709, %v186
  %v713 = vmul.f32 %v712, %v193
  %v714 = vtanh.pop %v713
  %v715 = vmul.f32 %v714, %v193
  %v716 = vadd.f32 %v715, %v194
  %v717 = vmul.f32 %v716, %v463
  %719 = vrot.lane.b32.xlu0 %v716, 64
  %v720 = vpop.permute.xlu0 %719
  %v722 = vmul.f32 %v716, %v720
  %724 = vrot.lane.b32.xlu0 %v722, 32
  %v725 = vpop.permute.xlu0 %724
  %v727 = vadd.f32 %v717, %v725
  %v728 = vtanh.pop %v727
  %730 = vrot.lane.b32.xlu0 %v728, 64
  %v731 = vpop.permute.xlu0 %730
  %v733 = vmul.f32 %v716, %v731
  %734 = vmatprep.subr.mxu0 0.0
  %735 = vmatpush1.msra.mxu0 %v195
  %736 = vmatprep.subr.mxu0 0.0
  %737 = vmatpush1.msra.mxu0 %v196
  %738 = vmatprep.subr.mxu0 0.0
  %739 = vmatpush1.msra.mxu0 %v197
  %740 = vmatprep.subr.mxu0 0.0
  %741 = vmatpush1.msra.mxu0 %v198
  %742 = vmatprep.subr.mxu0 0.0
  %743 = vmatpush1.msra.mxu0 0.0
  %744 = vmatprep.subr.mxu0 0.0
  %745 = vmatpush1.msra.mxu0 0.0
  %746 = vmatprep.subr.mxu0 0.0
  %747 = vmatpush1.msra.mxu0 0.0
  %748 = vmatprep.subr.mxu0 0.0
  %749 = vmatpush1.msra.mxu0 0.0
  %750 = vmatprep.subr.mxu0 0.0
  %751 = vmatpush1.msra.mxu0 0.0
  %752 = vmatprep.subr.mxu0 0.0
  %753 = vmatpush1.msra.mxu0 0.0
  %754 = vmatprep.subr.mxu0 0.0
  %755 = vmatpush1.msra.mxu0 0.0
  %756 = vmatprep.subr.mxu0 0.0
  %757 = vmatpush1.msra.mxu0 0.0
  %758 = vmatprep.subr.mxu0 0.0
  %759 = vmatpush1.msra.mxu0 0.0
  %760 = vmatprep.subr.mxu0 0.0
  %761 = vmatpush1.msra.mxu0 0.0
  %762 = vmatprep.subr.mxu0 0.0
  %763 = vmatpush1.msra.mxu0 0.0
  %764 = vmatprep.subr.mxu0 0.0
  %765 = vmatpush1.msra.mxu0 0.0
  %766 = vmatprep.subr.mxu0 0.0
  %767 = vmatpush1.msra.mxu0 0.0
  %768 = vmatprep.subr.mxu0 0.0
  %769 = vmatpush1.msra.mxu0 0.0
  %770 = vmatprep.subr.mxu0 0.0
  %771 = vmatpush1.msra.mxu0 0.0
  %772 = vmatprep.subr.mxu0 0.0
  %773 = vmatpush1.msra.mxu0 0.0
  %774 = vmatprep.subr.mxu0 0.0
  %775 = vmatpush1.msra.mxu0 0.0
  %776 = vmatprep.subr.mxu0 0.0
  %777 = vmatpush1.msra.mxu0 0.0
  %778 = vmatprep.subr.mxu0 0.0
  %779 = vmatpush1.msra.mxu0 0.0
  %780 = vmatprep.subr.mxu0 0.0
  %781 = vmatpush1.msra.mxu0 0.0
  %782 = vmatprep.subr.mxu0 0.0
  %783 = vmatpush1.msra.mxu0 0.0
  %784 = vmatprep.subr.mxu0 0.0
  %785 = vmatpush1.msra.mxu0 0.0
  %786 = vmatprep.subr.mxu0 0.0
  %787 = vmatpush1.msra.mxu0 0.0
  %788 = vmatprep.subr.mxu0 0.0
  %789 = vmatpush1.msra.mxu0 0.0
  %790 = vmatprep.subr.mxu0 0.0
  %791 = vmatpush1.msra.mxu0 0.0
  %792 = vmatprep.subr.mxu0 0.0
  %793 = vmatpush1.msra.mxu0 0.0
  %794 = vmatprep.subr.mxu0 0.0
  %795 = vmatpush1.msra.mxu0 0.0
  %796 = vmatprep.subr.mxu0 0.0
  %797 = vmatpush1.msra.mxu0 0.0
  %798 = vmatprep.mubr.f32.mxu0 0.0
  %799 = vmatmul.mubr.f32.gmra.mrb[0].mxu0 %v640
  %v800 = vpop.f32.mrb[0].mxu0
  %v801 = vadd.f32 0.0, %v800
  %v802 = vpop.f32.mrb[0].mxu0
  %803 = vdwg.mxu0
  %v804 = vadd.f32 %v153, %v801
  %v805 = vmul.f32 %v804, %v193
  %v806 = vtanh.pop %v805
  %v807 = vmul.f32 %v806, %v193
  %v808 = vadd.f32 %v807, %v194
  %v809 = vmul.f32 %v808, %v555
  %811 = vrot.lane.b32.xlu0 %v808, 64
  %v812 = vpop.permute.xlu0 %811
  %v814 = vmul.f32 %v808, %v812
  %816 = vrot.lane.b32.xlu0 %v814, 32
  %v817 = vpop.permute.xlu0 %816
  %v819 = vadd.f32 %v809, %v817
  %v820 = vtanh.pop %v819
  %822 = vrot.lane.b32.xlu0 %v820, 64
  %v823 = vpop.permute.xlu0 %822
  %v825 = vmul.f32 %v808, %v823
  %827 = vrot.lane.b32.xlu0 %v733, 32
  %v828 = vpop.permute.xlu0 %827
  %v829 = vsel %vm199, %v828, 0
  %831 = vmatprep.subr.mxu0 0.0
  %832 = vmatpush1.msra.mxu0 %v299
  %833 = vmatprep.subr.mxu0 0.0
  %834 = vmatpush1.msra.mxu0 %v300
  %835 = vmatprep.subr.mxu0 0.0
  %836 = vmatpush1.msra.mxu0 %v301
  %837 = vmatprep.subr.mxu0 0.0
  %838 = vmatpush1.msra.mxu0 %v302
  %839 = vmatprep.subr.mxu0 0.0
  %840 = vmatpush1.msra.mxu0 0.0
  %841 = vmatprep.subr.mxu0 0.0
  %842 = vmatpush1.msra.mxu0 0.0
  %843 = vmatprep.subr.mxu0 0.0
  %844 = vmatpush1.msra.mxu0 0.0
  %845 = vmatprep.subr.mxu0 0.0
  %846 = vmatpush1.msra.mxu0 0.0
  %847 = vmatprep.subr.mxu0 0.0
  %848 = vmatpush1.msra.mxu0 0.0
  %849 = vmatprep.subr.mxu0 0.0
  %850 = vmatpush1.msra.mxu0 0.0
  %851 = vmatprep.subr.mxu0 0.0
  %852 = vmatpush1.msra.mxu0 0.0
  %853 = vmatprep.subr.mxu0 0.0
  %854 = vmatpush1.msra.mxu0 0.0
  %855 = vmatprep.subr.mxu0 0.0
  %856 = vmatpush1.msra.mxu0 0.0
  %857 = vmatprep.subr.mxu0 0.0
  %858 = vmatpush1.msra.mxu0 0.0
  %859 = vmatprep.subr.mxu0 0.0
  %860 = vmatpush1.msra.mxu0 0.0
  %861 = vmatprep.subr.mxu0 0.0
  %862 = vmatpush1.msra.mxu0 0.0
  %863 = vmatprep.subr.mxu0 0.0
  %864 = vmatpush1.msra.mxu0 0.0
  %865 = vmatprep.subr.mxu0 0.0
  %866 = vmatpush1.msra.mxu0 0.0
  %867 = vmatprep.subr.mxu0 0.0
  %868 = vmatpush1.msra.mxu0 0.0
  %869 = vmatprep.subr.mxu0 0.0
  %870 = vmatpush1.msra.mxu0 0.0
  %871 = vmatprep.subr.mxu0 0.0
  %872 = vmatpush1.msra.mxu0 0.0
  %873 = vmatprep.subr.mxu0 0.0
  %874 = vmatpush1.msra.mxu0 0.0
  %875 = vmatprep.subr.mxu0 0.0
  %876 = vmatpush1.msra.mxu0 0.0
  %877 = vmatprep.subr.mxu0 0.0
  %878 = vmatpush1.msra.mxu0 0.0
  %879 = vmatprep.subr.mxu0 0.0
  %880 = vmatpush1.msra.mxu0 0.0
  %881 = vmatprep.subr.mxu0 0.0
  %882 = vmatpush1.msra.mxu0 0.0
  %883 = vmatprep.subr.mxu0 0.0
  %884 = vmatpush1.msra.mxu0 0.0
  %885 = vmatprep.subr.mxu0 0.0
  %886 = vmatpush1.msra.mxu0 0.0
  %887 = vmatprep.subr.mxu0 0.0
  %888 = vmatpush1.msra.mxu0 0.0
  %889 = vmatprep.subr.mxu0 0.0
  %890 = vmatpush1.msra.mxu0 0.0
  %891 = vmatprep.subr.mxu0 0.0
  %892 = vmatpush1.msra.mxu0 0.0
  %893 = vmatprep.subr.mxu0 0.0
  %894 = vmatpush1.msra.mxu0 0.0
  %895 = vmatprep.mubr.f32.mxu0 0.0
  %896 = vmatmul.mubr.f32.gmra.mrb[0].mxu0 %v829
  %v897 = vpop.f32.mrb[0].mxu0
  %v898 = vadd.f32 0.0, %v897
  %v899 = vpop.f32.mrb[0].mxu0
  %900 = vdwg.mxu0
  %902 = vrot.lane.b32.xlu0 %v825, 32
  %v903 = vpop.permute.xlu0 %902
  %v904 = vsel %vm199, %v903, 0
  %906 = vmatprep.subr.mxu0 0.0
  %907 = vmatpush1.msra.mxu0 %v295
  %908 = vmatprep.subr.mxu0 0.0
  %909 = vmatpush1.msra.mxu0 %v296
  %910 = vmatprep.subr.mxu0 0.0
  %911 = vmatpush1.msra.mxu0 %v297
  %912 = vmatprep.subr.mxu0 0.0
  %913 = vmatpush1.msra.mxu0 %v298
  %914 = vmatprep.subr.mxu0 0.0
  %915 = vmatpush1.msra.mxu0 0.0
  %916 = vmatprep.subr.mxu0 0.0
  %917 = vmatpush1.msra.mxu0 0.0
  %918 = vmatprep.subr.mxu0 0.0
  %919 = vmatpush1.msra.mxu0 0.0
  %920 = vmatprep.subr.mxu0 0.0
  %921 = vmatpush1.msra.mxu0 0.0
  %922 = vmatprep.subr.mxu0 0.0
  %923 = vmatpush1.msra.mxu0 0.0
  %924 = vmatprep.subr.mxu0 0.0
  %925 = vmatpush1.msra.mxu0 0.0
  %926 = vmatprep.subr.mxu0 0.0
  %927 = vmatpush1.msra.mxu0 0.0
  %928 = vmatprep.subr.mxu0 0.0
  %929 = vmatpush1.msra.mxu0 0.0
  %930 = vmatprep.subr.mxu0 0.0
  %931 = vmatpush1.msra.mxu0 0.0
  %932 = vmatprep.subr.mxu0 0.0
  %933 = vmatpush1.msra.mxu0 0.0
  %934 = vmatprep.subr.mxu0 0.0
  %935 = vmatpush1.msra.mxu0 0.0
  %936 = vmatprep.subr.mxu0 0.0
  %937 = vmatpush1.msra.mxu0 0.0
  %938 = vmatprep.subr.mxu0 0.0
  %939 = vmatpush1.msra.mxu0 0.0
  %940 = vmatprep.subr.mxu0 0.0
  %941 = vmatpush1.msra.mxu0 0.0
  %942 = vmatprep.subr.mxu0 0.0
  %943 = vmatpush1.msra.mxu0 0.0
  %944 = vmatprep.subr.mxu0 0.0
  %945 = vmatpush1.msra.mxu0 0.0
  %946 = vmatprep.subr.mxu0 0.0
  %947 = vmatpush1.msra.mxu0 0.0
  %948 = vmatprep.subr.mxu0 0.0
  %949 = vmatpush1.msra.mxu0 0.0
  %950 = vmatprep.subr.mxu0 0.0
  %951 = vmatpush1.msra.mxu0 0.0
  %952 = vmatprep.subr.mxu0 0.0
  %953 = vmatpush1.msra.mxu0 0.0
  %954 = vmatprep.subr.mxu0 0.0
  %955 = vmatpush1.msra.mxu0 0.0
  %956 = vmatprep.subr.mxu0 0.0
  %957 = vmatpush1.msra.mxu0 0.0
  %958 = vmatprep.subr.mxu0 0.0
  %959 = vmatpush1.msra.mxu0 0.0
  %960 = vmatprep.subr.mxu0 0.0
  %961 = vmatpush1.msra.mxu0 0.0
  %962 = vmatprep.subr.mxu0 0.0
  %963 = vmatpush1.msra.mxu0 0.0
  %964 = vmatprep.subr.mxu0 0.0
  %965 = vmatpush1.msra.mxu0 0.0
  %966 = vmatprep.subr.mxu0 0.0
  %967 = vmatpush1.msra.mxu0 0.0
  %968 = vmatprep.subr.mxu0 0.0
  %969 = vmatpush1.msra.mxu0 0.0
  %970 = vmatprep.mubr.f32.mxu0 0.0
  %971 = vmatmul.mubr.f32.gmra.mrb[0].mxu0 %v904
  %v972 = vpop.f32.mrb[0].mxu0
  %v973 = vadd.f32 %v898, %v972
  %v974 = vpop.f32.mrb[0].mxu0
  %975 = vdwg.mxu0
  %v976 = vadd.f32 %v973, %v186
  %v977 = vmul.f32 %v976, %v193
  %v978 = vtanh.pop %v977
  %v979 = vmul.f32 %v978, %v193
  %v980 = vadd.f32 %v979, %v194
  %v981 = vmul.f32 %v980, %v727
  %983 = vrot.lane.b32.xlu0 %v980, 64
  %v984 = vpop.permute.xlu0 %983
  %v986 = vmul.f32 %v980, %v984
  %988 = vrot.lane.b32.xlu0 %v986, 32
  %v989 = vpop.permute.xlu0 %988
  %v991 = vadd.f32 %v981, %v989
  %v992 = vtanh.pop %v991
  %994 = vrot.lane.b32.xlu0 %v992, 64
  %v995 = vpop.permute.xlu0 %994
  %v997 = vmul.f32 %v980, %v995
  %998 = vmatprep.subr.mxu0 0.0
  %999 = vmatpush1.msra.mxu0 %v195
  %1000 = vmatprep.subr.mxu0 0.0
  %1001 = vmatpush1.msra.mxu0 %v196
  %1002 = vmatprep.subr.mxu0 0.0
  %1003 = vmatpush1.msra.mxu0 %v197
  %1004 = vmatprep.subr.mxu0 0.0
  %1005 = vmatpush1.msra.mxu0 %v198
  %1006 = vmatprep.subr.mxu0 0.0
  %1007 = vmatpush1.msra.mxu0 0.0
  %1008 = vmatprep.subr.mxu0 0.0
  %1009 = vmatpush1.msra.mxu0 0.0
  %1010 = vmatprep.subr.mxu0 0.0
  %1011 = vmatpush1.msra.mxu0 0.0
  %1012 = vmatprep.subr.mxu0 0.0
  %1013 = vmatpush1.msra.mxu0 0.0
  %1014 = vmatprep.subr.mxu0 0.0
  %1015 = vmatpush1.msra.mxu0 0.0
  %1016 = vmatprep.subr.mxu0 0.0
  %1017 = vmatpush1.msra.mxu0 0.0
  %1018 = vmatprep.subr.mxu0 0.0
  %1019 = vmatpush1.msra.mxu0 0.0
  %1020 = vmatprep.subr.mxu0 0.0
  %1021 = vmatpush1.msra.mxu0 0.0
  %1022 = vmatprep.subr.mxu0 0.0
  %1023 = vmatpush1.msra.mxu0 0.0
  %1024 = vmatprep.subr.mxu0 0.0
  %1025 = vmatpush1.msra.mxu0 0.0
  %1026 = vmatprep.subr.mxu0 0.0
  %1027 = vmatpush1.msra.mxu0 0.0
  %1028 = vmatprep.subr.mxu0 0.0
  %1029 = vmatpush1.msra.mxu0 0.0
  %1030 = vmatprep.subr.mxu0 0.0
  %1031 = vmatpush1.msra.mxu0 0.0
  %1032 = vmatprep.subr.mxu0 0.0
  %1033 = vmatpush1.msra.mxu0 0.0
  %1034 = vmatprep.subr.mxu0 0.0
  %1035 = vmatpush1.msra.mxu0 0.0
  %1036 = vmatprep.subr.mxu0 0.0
  %1037 = vmatpush1.msra.mxu0 0.0
  %1038 = vmatprep.subr.mxu0 0.0
  %1039 = vmatpush1.msra.mxu0 0.0
  %1040 = vmatprep.subr.mxu0 0.0
  %1041 = vmatpush1.msra.mxu0 0.0
  %1042 = vmatprep.subr.mxu0 0.0
  %1043 = vmatpush1.msra.mxu0 0.0
  %1044 = vmatprep.subr.mxu0 0.0
  %1045 = vmatpush1.msra.mxu0 0.0
  %1046 = vmatprep.subr.mxu0 0.0
  %1047 = vmatpush1.msra.mxu0 0.0
  %1048 = vmatprep.subr.mxu0 0.0
  %1049 = vmatpush1.msra.mxu0 0.0
  %1050 = vmatprep.subr.mxu0 0.0
  %1051 = vmatpush1.msra.mxu0 0.0
  %1052 = vmatprep.subr.mxu0 0.0
  %1053 = vmatpush1.msra.mxu0 0.0
  %1054 = vmatprep.subr.mxu0 0.0
  %1055 = vmatpush1.msra.mxu0 0.0
  %1056 = vmatprep.subr.mxu0 0.0
  %1057 = vmatpush1.msra.mxu0 0.0
  %1058 = vmatprep.subr.mxu0 0.0
  %1059 = vmatpush1.msra.mxu0 0.0
  %1060 = vmatprep.subr.mxu0 0.0
  %1061 = vmatpush1.msra.mxu0 0.0
  %1062 = vmatprep.mubr.f32.mxu0 0.0
  %1063 = vmatmul.mubr.f32.gmra.mrb[0].mxu0 %v904
  %v1064 = vpop.f32.mrb[0].mxu0
  %v1065 = vadd.f32 0.0, %v1064
  %v1066 = vpop.f32.mrb[0].mxu0
  %1067 = vdwg.mxu0
  %v1068 = vadd.f32 %v158, %v1065
  %v1069 = vmul.f32 %v1068, %v193
  %v1070 = vtanh.pop %v1069
  %v1071 = vmul.f32 %v1070, %v193
  %v1072 = vadd.f32 %v1071, %v194
  %v1073 = vmul.f32 %v1072, %v819
  %1075 = vrot.lane.b32.xlu0 %v1072, 64
  %v1076 = vpop.permute.xlu0 %1075
  %v1078 = vmul.f32 %v1072, %v1076
  %1080 = vrot.lane.b32.xlu0 %v1078, 32
  %v1081 = vpop.permute.xlu0 %1080
  %v1083 = vadd.f32 %v1073, %v1081
  %v1084 = vtanh.pop %v1083
  %1086 = vrot.lane.b32.xlu0 %v1084, 64
  %v1087 = vpop.permute.xlu0 %1086
  %v1089 = vmul.f32 %v1072, %v1087
  %1091 = vrot.lane.b32.xlu0 %v997, 32
  %v1092 = vpop.permute.xlu0 %1091
  %v1093 = vsel %vm199, %v1092, 0
  %1095 = vmatprep.subr.mxu0 0.0
  %1096 = vmatpush1.msra.mxu0 %v299
  %1097 = vmatprep.subr.mxu0 0.0
  %1098 = vmatpush1.msra.mxu0 %v300
  %1099 = vmatprep.subr.mxu0 0.0
  %1100 = vmatpush1.msra.mxu0 %v301
  %1101 = vmatprep.subr.mxu0 0.0
  %1102 = vmatpush1.msra.mxu0 %v302
  %1103 = vmatprep.subr.mxu0 0.0
  %1104 = vmatpush1.msra.mxu0 0.0
  %1105 = vmatprep.subr.mxu0 0.0
  %1106 = vmatpush1.msra.mxu0 0.0
  %1107 = vmatprep.subr.mxu0 0.0
  %1108 = vmatpush1.msra.mxu0 0.0
  %1109 = vmatprep.subr.mxu0 0.0
  %1110 = vmatpush1.msra.mxu0 0.0
  %1111 = vmatprep.subr.mxu0 0.0
  %1112 = vmatpush1.msra.mxu0 0.0
  %1113 = vmatprep.subr.mxu0 0.0
  %1114 = vmatpush1.msra.mxu0 0.0
  %1115 = vmatprep.subr.mxu0 0.0
  %1116 = vmatpush1.msra.mxu0 0.0
  %1117 = vmatprep.subr.mxu0 0.0
  %1118 = vmatpush1.msra.mxu0 0.0
  %1119 = vmatprep.subr.mxu0 0.0
  %1120 = vmatpush1.msra.mxu0 0.0
  %1121 = vmatprep.subr.mxu0 0.0
  %1122 = vmatpush1.msra.mxu0 0.0
  %1123 = vmatprep.subr.mxu0 0.0
  %1124 = vmatpush1.msra.mxu0 0.0
  %1125 = vmatprep.subr.mxu0 0.0
  %1126 = vmatpush1.msra.mxu0 0.0
  %1127 = vmatprep.subr.mxu0 0.0
  %1128 = vmatpush1.msra.mxu0 0.0
  %1129 = vmatprep.subr.mxu0 0.0
  %1130 = vmatpush1.msra.mxu0 0.0
  %1131 = vmatprep.subr.mxu0 0.0
  %1132 = vmatpush1.msra.mxu0 0.0
  %1133 = vmatprep.subr.mxu0 0.0
  %1134 = vmatpush1.msra.mxu0 0.0
  %1135 = vmatprep.subr.mxu0 0.0
  %1136 = vmatpush1.msra.mxu0 0.0
  %1137 = vmatprep.subr.mxu0 0.0
  %1138 = vmatpush1.msra.mxu0 0.0
  %1139 = vmatprep.subr.mxu0 0.0
  %1140 = vmatpush1.msra.mxu0 0.0
  %1141 = vmatprep.subr.mxu0 0.0
  %1142 = vmatpush1.msra.mxu0 0.0
  %1143 = vmatprep.subr.mxu0 0.0
  %1144 = vmatpush1.msra.mxu0 0.0
  %1145 = vmatprep.subr.mxu0 0.0
  %1146 = vmatpush1.msra.mxu0 0.0
  %1147 = vmatprep.subr.mxu0 0.0
  %1148 = vmatpush1.msra.mxu0 0.0
  %1149 = vmatprep.subr.mxu0 0.0
  %1150 = vmatpush1.msra.mxu0 0.0
  %1151 = vmatprep.subr.mxu0 0.0
  %1152 = vmatpush1.msra.mxu0 0.0
  %1153 = vmatprep.subr.mxu0 0.0
  %1154 = vmatpush1.msra.mxu0 0.0
  %1155 = vmatprep.subr.mxu0 0.0
  %1156 = vmatpush1.msra.mxu0 0.0
  %1157 = vmatprep.subr.mxu0 0.0
  %1158 = vmatpush1.msra.mxu0 0.0
  %1159 = vmatprep.mubr.f32.mxu0 0.0
  %1160 = vmatmul.mubr.f32.gmra.mrb[0].mxu0 %v1093
  %v1161 = vpop.f32.mrb[0].mxu0
  %v1162 = vadd.f32 0.0, %v1161
  %v1163 = vpop.f32.mrb[0].mxu0
  %1164 = vdwg.mxu0
  %1166 = vrot.lane.b32.xlu0 %v1089, 32
  %v1167 = vpop.permute.xlu0 %1166
  %v1168 = vsel %vm199, %v1167, 0
  %1170 = vmatprep.subr.mxu0 0.0
  %1171 = vmatpush1.msra.mxu0 %v295
  %1172 = vmatprep.subr.mxu0 0.0
  %1173 = vmatpush1.msra.mxu0 %v296
  %1174 = vmatprep.subr.mxu0 0.0
  %1175 = vmatpush1.msra.mxu0 %v297
  %1176 = vmatprep.subr.mxu0 0.0
  %1177 = vmatpush1.msra.mxu0 %v298
  %1178 = vmatprep.subr.mxu0 0.0
  %1179 = vmatpush1.msra.mxu0 0.0
  %1180 = vmatprep.subr.mxu0 0.0
  %1181 = vmatpush1.msra.mxu0 0.0
  %1182 = vmatprep.subr.mxu0 0.0
  %1183 = vmatpush1.msra.mxu0 0.0
  %1184 = vmatprep.subr.mxu0 0.0
  %1185 = vmatpush1.msra.mxu0 0.0
  %1186 = vmatprep.subr.mxu0 0.0
  %1187 = vmatpush1.msra.mxu0 0.0
  %1188 = vmatprep.subr.mxu0 0.0
  %1189 = vmatpush1.msra.mxu0 0.0
  %1190 = vmatprep.subr.mxu0 0.0
  %1191 = vmatpush1.msra.mxu0 0.0
  %1192 = vmatprep.subr.mxu0 0.0
  %1193 = vmatpush1.msra.mxu0 0.0
  %1194 = vmatprep.subr.mxu0 0.0
  %1195 = vmatpush1.msra.mxu0 0.0
  %1196 = vmatprep.subr.mxu0 0.0
  %1197 = vmatpush1.msra.mxu0 0.0
  %1198 = vmatprep.subr.mxu0 0.0
  %1199 = vmatpush1.msra.mxu0 0.0
  %1200 = vmatprep.subr.mxu0 0.0
  %1201 = vmatpush1.msra.mxu0 0.0
  %1202 = vmatprep.subr.mxu0 0.0
  %1203 = vmatpush1.msra.mxu0 0.0
  %1204 = vmatprep.subr.mxu0 0.0
  %1205 = vmatpush1.msra.mxu0 0.0
  %1206 = vmatprep.subr.mxu0 0.0
  %1207 = vmatpush1.msra.mxu0 0.0
  %1208 = vmatprep.subr.mxu0 0.0
  %1209 = vmatpush1.msra.mxu0 0.0
  %1210 = vmatprep.subr.mxu0 0.0
  %1211 = vmatpush1.msra.mxu0 0.0
  %1212 = vmatprep.subr.mxu0 0.0
  %1213 = vmatpush1.msra.mxu0 0.0
  %1214 = vmatprep.subr.mxu0 0.0
  %1215 = vmatpush1.msra.mxu0 0.0
  %1216 = vmatprep.subr.mxu0 0.0
  %1217 = vmatpush1.msra.mxu0 0.0
  %1218 = vmatprep.subr.mxu0 0.0
  %1219 = vmatpush1.msra.mxu0 0.0
  %1220 = vmatprep.subr.mxu0 0.0
  %1221 = vmatpush1.msra.mxu0 0.0
  %1222 = vmatprep.subr.mxu0 0.0
  %1223 = vmatpush1.msra.mxu0 0.0
  %1224 = vmatprep.subr.mxu0 0.0
  %1225 = vmatpush1.msra.mxu0 0.0
  %1226 = vmatprep.subr.mxu0 0.0
  %1227 = vmatpush1.msra.mxu0 0.0
  %1228 = vmatprep.subr.mxu0 0.0
  %1229 = vmatpush1.msra.mxu0 0.0
  %1230 = vmatprep.subr.mxu0 0.0
  %1231 = vmatpush1.msra.mxu0 0.0
  %1232 = vmatprep.subr.mxu0 0.0
  %1233 = vmatpush1.msra.mxu0 0.0
  %1234 = vmatprep.mubr.f32.mxu0 0.0
  %1235 = vmatmul.mubr.f32.gmra.mrb[0].mxu0 %v1168
  %v1236 = vpop.f32.mrb[0].mxu0
  %v1237 = vadd.f32 %v1162, %v1236
  %v1238 = vpop.f32.mrb[0].mxu0
  %1239 = vdwg.mxu0
  %v1240 = vadd.f32 %v1237, %v186
  %v1241 = vmul.f32 %v1240, %v193
  %v1242 = vtanh.pop %v1241
  %v1243 = vmul.f32 %v1242, %v193
  %v1244 = vadd.f32 %v1243, %v194
  %v1245 = vmul.f32 %v1244, %v991
  %1247 = vrot.lane.b32.xlu0 %v1244, 64
  %v1248 = vpop.permute.xlu0 %1247
  %v1250 = vmul.f32 %v1244, %v1248
  %1252 = vrot.lane.b32.xlu0 %v1250, 32
  %v1253 = vpop.permute.xlu0 %1252
  %v1255 = vadd.f32 %v1245, %v1253
  %v1256 = vtanh.pop %v1255
  %1258 = vrot.lane.b32.xlu0 %v1256, 64
  %v1259 = vpop.permute.xlu0 %1258
  %v1261 = vmul.f32 %v1244, %v1259
  %1262 = vmatprep.subr.mxu0 0.0
  %1263 = vmatpush1.msra.mxu0 %v195
  %1264 = vmatprep.subr.mxu0 0.0
  %1265 = vmatpush1.msra.mxu0 %v196
  %1266 = vmatprep.subr.mxu0 0.0
  %1267 = vmatpush1.msra.mxu0 %v197
  %1268 = vmatprep.subr.mxu0 0.0
  %1269 = vmatpush1.msra.mxu0 %v198
  %1270 = vmatprep.subr.mxu0 0.0
  %1271 = vmatpush1.msra.mxu0 0.0
  %1272 = vmatprep.subr.mxu0 0.0
  %1273 = vmatpush1.msra.mxu0 0.0
  %1274 = vmatprep.subr.mxu0 0.0
  %1275 = vmatpush1.msra.mxu0 0.0
  %1276 = vmatprep.subr.mxu0 0.0
  %1277 = vmatpush1.msra.mxu0 0.0
  %1278 = vmatprep.subr.mxu0 0.0
  %1279 = vmatpush1.msra.mxu0 0.0
  %1280 = vmatprep.subr.mxu0 0.0
  %1281 = vmatpush1.msra.mxu0 0.0
  %1282 = vmatprep.subr.mxu0 0.0
  %1283 = vmatpush1.msra.mxu0 0.0
  %1284 = vmatprep.subr.mxu0 0.0
  %1285 = vmatpush1.msra.mxu0 0.0
  %1286 = vmatprep.subr.mxu0 0.0
  %1287 = vmatpush1.msra.mxu0 0.0
  %1288 = vmatprep.subr.mxu0 0.0
  %1289 = vmatpush1.msra.mxu0 0.0
  %1290 = vmatprep.subr.mxu0 0.0
  %1291 = vmatpush1.msra.mxu0 0.0
  %1292 = vmatprep.subr.mxu0 0.0
  %1293 = vmatpush1.msra.mxu0 0.0
  %1294 = vmatprep.subr.mxu0 0.0
  %1295 = vmatpush1.msra.mxu0 0.0
  %1296 = vmatprep.subr.mxu0 0.0
  %1297 = vmatpush1.msra.mxu0 0.0
  %1298 = vmatprep.subr.mxu0 0.0
  %1299 = vmatpush1.msra.mxu0 0.0
  %1300 = vmatprep.subr.mxu0 0.0
  %1301 = vmatpush1.msra.mxu0 0.0
  %1302 = vmatprep.subr.mxu0 0.0
  %1303 = vmatpush1.msra.mxu0 0.0
  %1304 = vmatprep.subr.mxu0 0.0
  %1305 = vmatpush1.msra.mxu0 0.0
  %1306 = vmatprep.subr.mxu0 0.0
  %1307 = vmatpush1.msra.mxu0 0.0
  %1308 = vmatprep.subr.mxu0 0.0
  %1309 = vmatpush1.msra.mxu0 0.0
  %1310 = vmatprep.subr.mxu0 0.0
  %1311 = vmatpush1.msra.mxu0 0.0
  %1312 = vmatprep.subr.mxu0 0.0
  %1313 = vmatpush1.msra.mxu0 0.0
  %1314 = vmatprep.subr.mxu0 0.0
  %1315 = vmatpush1.msra.mxu0 0.0
  %1316 = vmatprep.subr.mxu0 0.0
  %1317 = vmatpush1.msra.mxu0 0.0
  %1318 = vmatprep.subr.mxu0 0.0
  %1319 = vmatpush1.msra.mxu0 0.0
  %1320 = vmatprep.subr.mxu0 0.0
  %1321 = vmatpush1.msra.mxu0 0.0
  %1322 = vmatprep.subr.mxu0 0.0
  %1323 = vmatpush1.msra.mxu0 0.0
  %1324 = vmatprep.subr.mxu0 0.0
  %1325 = vmatpush1.msra.mxu0 0.0
  %1326 = vmatprep.mubr.f32.mxu0 0.0
  %1327 = vmatmul.mubr.f32.gmra.mrb[0].mxu0 %v1168
  %v1328 = vpop.f32.mrb[0].mxu0
  %v1329 = vadd.f32 0.0, %v1328
  %v1330 = vpop.f32.mrb[0].mxu0
  %1331 = vdwg.mxu0
  %v1332 = vadd.f32 %v163, %v1329
  %v1333 = vmul.f32 %v1332, %v193
  %v1334 = vtanh.pop %v1333
  %v1335 = vmul.f32 %v1334, %v193
  %v1336 = vadd.f32 %v1335, %v194
  %v1337 = vmul.f32 %v1336, %v1083
  %1339 = vrot.lane.b32.xlu0 %v1336, 64
  %v1340 = vpop.permute.xlu0 %1339
  %v1342 = vmul.f32 %v1336, %v1340
  %1344 = vrot.lane.b32.xlu0 %v1342, 32
  %v1345 = vpop.permute.xlu0 %1344
  %v1347 = vadd.f32 %v1337, %v1345
  %v1348 = vtanh.pop %v1347
  %1350 = vrot.lane.b32.xlu0 %v1348, 64
  %v1351 = vpop.permute.xlu0 %1350
  %v1353 = vmul.f32 %v1336, %v1351
  %1355 = vrot.lane.b32.xlu0 %v1261, 32
  %v1356 = vpop.permute.xlu0 %1355
  %v1357 = vsel %vm199, %v1356, 0
  %1359 = vmatprep.subr.mxu0 0.0
  %1360 = vmatpush1.msra.mxu0 %v299
  %1361 = vmatprep.subr.mxu0 0.0
  %1362 = vmatpush1.msra.mxu0 %v300
  %1363 = vmatprep.subr.mxu0 0.0
  %1364 = vmatpush1.msra.mxu0 %v301
  %1365 = vmatprep.subr.mxu0 0.0
  %1366 = vmatpush1.msra.mxu0 %v302
  %1367 = vmatprep.subr.mxu0 0.0
  %1368 = vmatpush1.msra.mxu0 0.0
  %1369 = vmatprep.subr.mxu0 0.0
  %1370 = vmatpush1.msra.mxu0 0.0
  %1371 = vmatprep.subr.mxu0 0.0
  %1372 = vmatpush1.msra.mxu0 0.0
  %1373 = vmatprep.subr.mxu0 0.0
  %1374 = vmatpush1.msra.mxu0 0.0
  %1375 = vmatprep.subr.mxu0 0.0
  %1376 = vmatpush1.msra.mxu0 0.0
  %1377 = vmatprep.subr.mxu0 0.0
  %1378 = vmatpush1.msra.mxu0 0.0
  %1379 = vmatprep.subr.mxu0 0.0
  %1380 = vmatpush1.msra.mxu0 0.0
  %1381 = vmatprep.subr.mxu0 0.0
  %1382 = vmatpush1.msra.mxu0 0.0
  %1383 = vmatprep.subr.mxu0 0.0
  %1384 = vmatpush1.msra.mxu0 0.0
  %1385 = vmatprep.subr.mxu0 0.0
  %1386 = vmatpush1.msra.mxu0 0.0
  %1387 = vmatprep.subr.mxu0 0.0
  %1388 = vmatpush1.msra.mxu0 0.0
  %1389 = vmatprep.subr.mxu0 0.0
  %1390 = vmatpush1.msra.mxu0 0.0
  %1391 = vmatprep.subr.mxu0 0.0
  %1392 = vmatpush1.msra.mxu0 0.0
  %1393 = vmatprep.subr.mxu0 0.0
  %1394 = vmatpush1.msra.mxu0 0.0
  %1395 = vmatprep.subr.mxu0 0.0
  %1396 = vmatpush1.msra.mxu0 0.0
  %1397 = vmatprep.subr.mxu0 0.0
  %1398 = vmatpush1.msra.mxu0 0.0
  %1399 = vmatprep.subr.mxu0 0.0
  %1400 = vmatpush1.msra.mxu0 0.0
  %1401 = vmatprep.subr.mxu0 0.0
  %1402 = vmatpush1.msra.mxu0 0.0
  %1403 = vmatprep.subr.mxu0 0.0
  %1404 = vmatpush1.msra.mxu0 0.0
  %1405 = vmatprep.subr.mxu0 0.0
  %1406 = vmatpush1.msra.mxu0 0.0
  %1407 = vmatprep.subr.mxu0 0.0
  %1408 = vmatpush1.msra.mxu0 0.0
  %1409 = vmatprep.subr.mxu0 0.0
  %1410 = vmatpush1.msra.mxu0 0.0
  %1411 = vmatprep.subr.mxu0 0.0
  %1412 = vmatpush1.msra.mxu0 0.0
  %1413 = vmatprep.subr.mxu0 0.0
  %1414 = vmatpush1.msra.mxu0 0.0
  %1415 = vmatprep.subr.mxu0 0.0
  %1416 = vmatpush1.msra.mxu0 0.0
  %1417 = vmatprep.subr.mxu0 0.0
  %1418 = vmatpush1.msra.mxu0 0.0
  %1419 = vmatprep.subr.mxu0 0.0
  %1420 = vmatpush1.msra.mxu0 0.0
  %1421 = vmatprep.subr.mxu0 0.0
  %1422 = vmatpush1.msra.mxu0 0.0
  %1423 = vmatprep.mubr.f32.mxu0 0.0
  %1424 = vmatmul.mubr.f32.gmra.mrb[0].mxu0 %v1357
  %v1425 = vpop.f32.mrb[0].mxu0
  %v1426 = vadd.f32 0.0, %v1425
  %v1427 = vpop.f32.mrb[0].mxu0
  %1428 = vdwg.mxu0
  %1430 = vrot.lane.b32.xlu0 %v1353, 32
  %v1431 = vpop.permute.xlu0 %1430
  %v1432 = vsel %vm199, %v1431, 0
  %1434 = vmatprep.subr.mxu0 0.0
  %1435 = vmatpush1.msra.mxu0 %v295
  %1436 = vmatprep.subr.mxu0 0.0
  %1437 = vmatpush1.msra.mxu0 %v296
  %1438 = vmatprep.subr.mxu0 0.0
  %1439 = vmatpush1.msra.mxu0 %v297
  %1440 = vmatprep.subr.mxu0 0.0
  %1441 = vmatpush1.msra.mxu0 %v298
  %1442 = vmatprep.subr.mxu0 0.0
  %1443 = vmatpush1.msra.mxu0 0.0
  %1444 = vmatprep.subr.mxu0 0.0
  %1445 = vmatpush1.msra.mxu0 0.0
  %1446 = vmatprep.subr.mxu0 0.0
  %1447 = vmatpush1.msra.mxu0 0.0
  %1448 = vmatprep.subr.mxu0 0.0
  %1449 = vmatpush1.msra.mxu0 0.0
  %1450 = vmatprep.subr.mxu0 0.0
  %1451 = vmatpush1.msra.mxu0 0.0
  %1452 = vmatprep.subr.mxu0 0.0
  %1453 = vmatpush1.msra.mxu0 0.0
  %1454 = vmatprep.subr.mxu0 0.0
  %1455 = vmatpush1.msra.mxu0 0.0
  %1456 = vmatprep.subr.mxu0 0.0
  %1457 = vmatpush1.msra.mxu0 0.0
  %1458 = vmatprep.subr.mxu0 0.0
  %1459 = vmatpush1.msra.mxu0 0.0
  %1460 = vmatprep.subr.mxu0 0.0
  %1461 = vmatpush1.msra.mxu0 0.0
  %1462 = vmatprep.subr.mxu0 0.0
  %1463 = vmatpush1.msra.mxu0 0.0
  %1464 = vmatprep.subr.mxu0 0.0
  %1465 = vmatpush1.msra.mxu0 0.0
  %1466 = vmatprep.subr.mxu0 0.0
  %1467 = vmatpush1.msra.mxu0 0.0
  %1468 = vmatprep.subr.mxu0 0.0
  %1469 = vmatpush1.msra.mxu0 0.0
  %1470 = vmatprep.subr.mxu0 0.0
  %1471 = vmatpush1.msra.mxu0 0.0
  %1472 = vmatprep.subr.mxu0 0.0
  %1473 = vmatpush1.msra.mxu0 0.0
  %1474 = vmatprep.subr.mxu0 0.0
  %1475 = vmatpush1.msra.mxu0 0.0
  %1476 = vmatprep.subr.mxu0 0.0
  %1477 = vmatpush1.msra.mxu0 0.0
  %1478 = vmatprep.subr.mxu0 0.0
  %1479 = vmatpush1.msra.mxu0 0.0
  %1480 = vmatprep.subr.mxu0 0.0
  %1481 = vmatpush1.msra.mxu0 0.0
  %1482 = vmatprep.subr.mxu0 0.0
  %1483 = vmatpush1.msra.mxu0 0.0
  %1484 = vmatprep.subr.mxu0 0.0
  %1485 = vmatpush1.msra.mxu0 0.0
  %1486 = vmatprep.subr.mxu0 0.0
  %1487 = vmatpush1.msra.mxu0 0.0
  %1488 = vmatprep.subr.mxu0 0.0
  %1489 = vmatpush1.msra.mxu0 0.0
  %1490 = vmatprep.subr.mxu0 0.0
  %1491 = vmatpush1.msra.mxu0 0.0
  %1492 = vmatprep.subr.mxu0 0.0
  %1493 = vmatpush1.msra.mxu0 0.0
  %1494 = vmatprep.subr.mxu0 0.0
  %1495 = vmatpush1.msra.mxu0 0.0
  %1496 = vmatprep.subr.mxu0 0.0
  %1497 = vmatpush1.msra.mxu0 0.0
  %1498 = vmatprep.mubr.f32.mxu0 0.0
  %1499 = vmatmul.mubr.f32.gmra.mrb[0].mxu0 %v1432
  %v1500 = vpop.f32.mrb[0].mxu0
  %v1501 = vadd.f32 %v1426, %v1500
  %v1502 = vpop.f32.mrb[0].mxu0
  %1503 = vdwg.mxu0
  %v1504 = vadd.f32 %v1501, %v186
  %v1505 = vmul.f32 %v1504, %v193
  %v1506 = vtanh.pop %v1505
  %v1507 = vmul.f32 %v1506, %v193
  %v1508 = vadd.f32 %v1507, %v194
  %v1509 = vmul.f32 %v1508, %v1255
  %1511 = vrot.lane.b32.xlu0 %v1508, 64
  %v1512 = vpop.permute.xlu0 %1511
  %v1514 = vmul.f32 %v1508, %v1512
  %1516 = vrot.lane.b32.xlu0 %v1514, 32
  %v1517 = vpop.permute.xlu0 %1516
  %v1519 = vadd.f32 %v1509, %v1517
  %v1520 = vtanh.pop %v1519
  %1522 = vrot.lane.b32.xlu0 %v1520, 64
  %v1523 = vpop.permute.xlu0 %1522
  %v1525 = vmul.f32 %v1508, %v1523
  %1526 = vmatprep.subr.mxu0 0.0
  %1527 = vmatpush1.msra.mxu0 %v195
  %1528 = vmatprep.subr.mxu0 0.0
  %1529 = vmatpush1.msra.mxu0 %v196
  %1530 = vmatprep.subr.mxu0 0.0
  %1531 = vmatpush1.msra.mxu0 %v197
  %1532 = vmatprep.subr.mxu0 0.0
  %1533 = vmatpush1.msra.mxu0 %v198
  %1534 = vmatprep.subr.mxu0 0.0
  %1535 = vmatpush1.msra.mxu0 0.0
  %1536 = vmatprep.subr.mxu0 0.0
  %1537 = vmatpush1.msra.mxu0 0.0
  %1538 = vmatprep.subr.mxu0 0.0
  %1539 = vmatpush1.msra.mxu0 0.0
  %1540 = vmatprep.subr.mxu0 0.0
  %1541 = vmatpush1.msra.mxu0 0.0
  %1542 = vmatprep.subr.mxu0 0.0
  %1543 = vmatpush1.msra.mxu0 0.0
  %1544 = vmatprep.subr.mxu0 0.0
  %1545 = vmatpush1.msra.mxu0 0.0
  %1546 = vmatprep.subr.mxu0 0.0
  %1547 = vmatpush1.msra.mxu0 0.0
  %1548 = vmatprep.subr.mxu0 0.0
  %1549 = vmatpush1.msra.mxu0 0.0
  %1550 = vmatprep.subr.mxu0 0.0
  %1551 = vmatpush1.msra.mxu0 0.0
  %1552 = vmatprep.subr.mxu0 0.0
  %1553 = vmatpush1.msra.mxu0 0.0
  %1554 = vmatprep.subr.mxu0 0.0
  %1555 = vmatpush1.msra.mxu0 0.0
  %1556 = vmatprep.subr.mxu0 0.0
  %1557 = vmatpush1.msra.mxu0 0.0
  %1558 = vmatprep.subr.mxu0 0.0
  %1559 = vmatpush1.msra.mxu0 0.0
  %1560 = vmatprep.subr.mxu0 0.0
  %1561 = vmatpush1.msra.mxu0 0.0
  %1562 = vmatprep.subr.mxu0 0.0
  %1563 = vmatpush1.msra.mxu0 0.0
  %1564 = vmatprep.subr.mxu0 0.0
  %1565 = vmatpush1.msra.mxu0 0.0
  %1566 = vmatprep.subr.mxu0 0.0
  %1567 = vmatpush1.msra.mxu0 0.0
  %1568 = vmatprep.subr.mxu0 0.0
  %1569 = vmatpush1.msra.mxu0 0.0
  %1570 = vmatprep.subr.mxu0 0.0
  %1571 = vmatpush1.msra.mxu0 0.0
  %1572 = vmatprep.subr.mxu0 0.0
  %1573 = vmatpush1.msra.mxu0 0.0
  %1574 = vmatprep.subr.mxu0 0.0
  %1575 = vmatpush1.msra.mxu0 0.0
  %1576 = vmatprep.subr.mxu0 0.0
  %1577 = vmatpush1.msra.mxu0 0.0
  %1578 = vmatprep.subr.mxu0 0.0
  %1579 = vmatpush1.msra.mxu0 0.0
  %1580 = vmatprep.subr.mxu0 0.0
  %1581 = vmatpush1.msra.mxu0 0.0
  %1582 = vmatprep.subr.mxu0 0.0
  %1583 = vmatpush1.msra.mxu0 0.0
  %1584 = vmatprep.subr.mxu0 0.0
  %1585 = vmatpush1.msra.mxu0 0.0
  %1586 = vmatprep.subr.mxu0 0.0
  %1587 = vmatpush1.msra.mxu0 0.0
  %1588 = vmatprep.subr.mxu0 0.0
  %1589 = vmatpush1.msra.mxu0 0.0
  %1590 = vmatprep.mubr.f32.mxu0 0.0
  %1591 = vmatmul.mubr.f32.gmra.mrb[0].mxu0 %v1432
  %v1592 = vpop.f32.mrb[0].mxu0
  %v1593 = vadd.f32 0.0, %v1592
  %v1594 = vpop.f32.mrb[0].mxu0
  %1595 = vdwg.mxu0
  %v1596 = vadd.f32 %v168, %v1593
  %v1597 = vmul.f32 %v1596, %v193
  %v1598 = vtanh.pop %v1597
  %v1599 = vmul.f32 %v1598, %v193
  %v1600 = vadd.f32 %v1599, %v194
  %v1601 = vmul.f32 %v1600, %v1347
  %1603 = vrot.lane.b32.xlu0 %v1600, 64
  %v1604 = vpop.permute.xlu0 %1603
  %v1606 = vmul.f32 %v1600, %v1604
  %1608 = vrot.lane.b32.xlu0 %v1606, 32
  %v1609 = vpop.permute.xlu0 %1608
  %v1611 = vadd.f32 %v1601, %v1609
  %v1612 = vtanh.pop %v1611
  %1614 = vrot.lane.b32.xlu0 %v1612, 64
  %v1615 = vpop.permute.xlu0 %1614
  %v1617 = vmul.f32 %v1600, %v1615
  %1619 = vrot.lane.b32.xlu0 %v1525, 32
  %v1620 = vpop.permute.xlu0 %1619
  %v1621 = vsel %vm199, %v1620, 0
  %1623 = vmatprep.subr.mxu0 0.0
  %1624 = vmatpush1.msra.mxu0 %v299
  %1625 = vmatprep.subr.mxu0 0.0
  %1626 = vmatpush1.msra.mxu0 %v300
  %1627 = vmatprep.subr.mxu0 0.0
  %1628 = vmatpush1.msra.mxu0 %v301
  %1629 = vmatprep.subr.mxu0 0.0
  %1630 = vmatpush1.msra.mxu0 %v302
  %1631 = vmatprep.subr.mxu0 0.0
  %1632 = vmatpush1.msra.mxu0 0.0
  %1633 = vmatprep.subr.mxu0 0.0
  %1634 = vmatpush1.msra.mxu0 0.0
  %1635 = vmatprep.subr.mxu0 0.0
  %1636 = vmatpush1.msra.mxu0 0.0
  %1637 = vmatprep.subr.mxu0 0.0
  %1638 = vmatpush1.msra.mxu0 0.0
  %1639 = vmatprep.subr.mxu0 0.0
  %1640 = vmatpush1.msra.mxu0 0.0
  %1641 = vmatprep.subr.mxu0 0.0
  %1642 = vmatpush1.msra.mxu0 0.0
  %1643 = vmatprep.subr.mxu0 0.0
  %1644 = vmatpush1.msra.mxu0 0.0
  %1645 = vmatprep.subr.mxu0 0.0
  %1646 = vmatpush1.msra.mxu0 0.0
  %1647 = vmatprep.subr.mxu0 0.0
  %1648 = vmatpush1.msra.mxu0 0.0
  %1649 = vmatprep.subr.mxu0 0.0
  %1650 = vmatpush1.msra.mxu0 0.0
  %1651 = vmatprep.subr.mxu0 0.0
  %1652 = vmatpush1.msra.mxu0 0.0
  %1653 = vmatprep.subr.mxu0 0.0
  %1654 = vmatpush1.msra.mxu0 0.0
  %1655 = vmatprep.subr.mxu0 0.0
  %1656 = vmatpush1.msra.mxu0 0.0
  %1657 = vmatprep.subr.mxu0 0.0
  %1658 = vmatpush1.msra.mxu0 0.0
  %1659 = vmatprep.subr.mxu0 0.0
  %1660 = vmatpush1.msra.mxu0 0.0
  %1661 = vmatprep.subr.mxu0 0.0
  %1662 = vmatpush1.msra.mxu0 0.0
  %1663 = vmatprep.subr.mxu0 0.0
  %1664 = vmatpush1.msra.mxu0 0.0
  %1665 = vmatprep.subr.mxu0 0.0
  %1666 = vmatpush1.msra.mxu0 0.0
  %1667 = vmatprep.subr.mxu0 0.0
  %1668 = vmatpush1.msra.mxu0 0.0
  %1669 = vmatprep.subr.mxu0 0.0
  %1670 = vmatpush1.msra.mxu0 0.0
  %1671 = vmatprep.subr.mxu0 0.0
  %1672 = vmatpush1.msra.mxu0 0.0
  %1673 = vmatprep.subr.mxu0 0.0
  %1674 = vmatpush1.msra.mxu0 0.0
  %1675 = vmatprep.subr.mxu0 0.0
  %1676 = vmatpush1.msra.mxu0 0.0
  %1677 = vmatprep.subr.mxu0 0.0
  %1678 = vmatpush1.msra.mxu0 0.0
  %1679 = vmatprep.subr.mxu0 0.0
  %1680 = vmatpush1.msra.mxu0 0.0
  %1681 = vmatprep.subr.mxu0 0.0
  %1682 = vmatpush1.msra.mxu0 0.0
  %1683 = vmatprep.subr.mxu0 0.0
  %1684 = vmatpush1.msra.mxu0 0.0
  %1685 = vmatprep.subr.mxu0 0.0
  %1686 = vmatpush1.msra.mxu0 0.0
  %1687 = vmatprep.mubr.f32.mxu0 0.0
  %1688 = vmatmul.mubr.f32.gmra.mrb[0].mxu0 %v1621
  %v1689 = vpop.f32.mrb[0].mxu0
  %v1690 = vadd.f32 0.0, %v1689
  %v1691 = vpop.f32.mrb[0].mxu0
  %1692 = vdwg.mxu0
  %1694 = vrot.lane.b32.xlu0 %v1617, 32
  %v1695 = vpop.permute.xlu0 %1694
  %v1696 = vsel %vm199, %v1695, 0
  %1698 = vmatprep.subr.mxu0 0.0
  %1699 = vmatpush1.msra.mxu0 %v295
  %1700 = vmatprep.subr.mxu0 0.0
  %1701 = vmatpush1.msra.mxu0 %v296
  %1702 = vmatprep.subr.mxu0 0.0
  %1703 = vmatpush1.msra.mxu0 %v297
  %1704 = vmatprep.subr.mxu0 0.0
  %1705 = vmatpush1.msra.mxu0 %v298
  %1706 = vmatprep.subr.mxu0 0.0
  %1707 = vmatpush1.msra.mxu0 0.0
  %1708 = vmatprep.subr.mxu0 0.0
  %1709 = vmatpush1.msra.mxu0 0.0
  %1710 = vmatprep.subr.mxu0 0.0
  %1711 = vmatpush1.msra.mxu0 0.0
  %1712 = vmatprep.subr.mxu0 0.0
  %1713 = vmatpush1.msra.mxu0 0.0
  %1714 = vmatprep.subr.mxu0 0.0
  %1715 = vmatpush1.msra.mxu0 0.0
  %1716 = vmatprep.subr.mxu0 0.0
  %1717 = vmatpush1.msra.mxu0 0.0
  %1718 = vmatprep.subr.mxu0 0.0
  %1719 = vmatpush1.msra.mxu0 0.0
  %1720 = vmatprep.subr.mxu0 0.0
  %1721 = vmatpush1.msra.mxu0 0.0
  %1722 = vmatprep.subr.mxu0 0.0
  %1723 = vmatpush1.msra.mxu0 0.0
  %1724 = vmatprep.subr.mxu0 0.0
  %1725 = vmatpush1.msra.mxu0 0.0
  %1726 = vmatprep.subr.mxu0 0.0
  %1727 = vmatpush1.msra.mxu0 0.0
  %1728 = vmatprep.subr.mxu0 0.0
  %1729 = vmatpush1.msra.mxu0 0.0
  %1730 = vmatprep.subr.mxu0 0.0
  %1731 = vmatpush1.msra.mxu0 0.0
  %1732 = vmatprep.subr.mxu0 0.0
  %1733 = vmatpush1.msra.mxu0 0.0
  %1734 = vmatprep.subr.mxu0 0.0
  %1735 = vmatpush1.msra.mxu0 0.0
  %1736 = vmatprep.subr.mxu0 0.0
  %1737 = vmatpush1.msra.mxu0 0.0
  %1738 = vmatprep.subr.mxu0 0.0
  %1739 = vmatpush1.msra.mxu0 0.0
  %1740 = vmatprep.subr.mxu0 0.0
  %1741 = vmatpush1.msra.mxu0 0.0
  %1742 = vmatprep.subr.mxu0 0.0
  %1743 = vmatpush1.msra.mxu0 0.0
  %1744 = vmatprep.subr.mxu0 0.0
  %1745 = vmatpush1.msra.mxu0 0.0
  %1746 = vmatprep.subr.mxu0 0.0
  %1747 = vmatpush1.msra.mxu0 0.0
  %1748 = vmatprep.subr.mxu0 0.0
  %1749 = vmatpush1.msra.mxu0 0.0
  %1750 = vmatprep.subr.mxu0 0.0
  %1751 = vmatpush1.msra.mxu0 0.0
  %1752 = vmatprep.subr.mxu0 0.0
  %1753 = vmatpush1.msra.mxu0 0.0
  %1754 = vmatprep.subr.mxu0 0.0
  %1755 = vmatpush1.msra.mxu0 0.0
  %1756 = vmatprep.subr.mxu0 0.0
  %1757 = vmatpush1.msra.mxu0 0.0
  %1758 = vmatprep.subr.mxu0 0.0
  %1759 = vmatpush1.msra.mxu0 0.0
  %1760 = vmatprep.subr.mxu0 0.0
  %1761 = vmatpush1.msra.mxu0 0.0
  %1762 = vmatprep.mubr.f32.mxu0 0.0
  %1763 = vmatmul.mubr.f32.gmra.mrb[0].mxu0 %v1696
  %v1764 = vpop.f32.mrb[0].mxu0
  %v1765 = vadd.f32 %v1690, %v1764
  %v1766 = vpop.f32.mrb[0].mxu0
  %1767 = vdwg.mxu0
  %v1768 = vadd.f32 %v1765, %v186
  %v1769 = vmul.f32 %v1768, %v193
  %v1770 = vtanh.pop %v1769
  %v1771 = vmul.f32 %v1770, %v193
  %v1772 = vadd.f32 %v1771, %v194
  %v1773 = vmul.f32 %v1772, %v1519
  %1775 = vrot.lane.b32.xlu0 %v1772, 64
  %v1776 = vpop.permute.xlu0 %1775
  %v1778 = vmul.f32 %v1772, %v1776
  %1780 = vrot.lane.b32.xlu0 %v1778, 32
  %v1781 = vpop.permute.xlu0 %1780
  %v1783 = vadd.f32 %v1773, %v1781
  %v1784 = vtanh.pop %v1783
  %1786 = vrot.lane.b32.xlu0 %v1784, 64
  %v1787 = vpop.permute.xlu0 %1786
  %v1789 = vmul.f32 %v1772, %v1787
  %1790 = vmatprep.subr.mxu0 0.0
  %1791 = vmatpush1.msra.mxu0 %v195
  %1792 = vmatprep.subr.mxu0 0.0
  %1793 = vmatpush1.msra.mxu0 %v196
  %1794 = vmatprep.subr.mxu0 0.0
  %1795 = vmatpush1.msra.mxu0 %v197
  %1796 = vmatprep.subr.mxu0 0.0
  %1797 = vmatpush1.msra.mxu0 %v198
  %1798 = vmatprep.subr.mxu0 0.0
  %1799 = vmatpush1.msra.mxu0 0.0
  %1800 = vmatprep.subr.mxu0 0.0
  %1801 = vmatpush1.msra.mxu0 0.0
  %1802 = vmatprep.subr.mxu0 0.0
  %1803 = vmatpush1.msra.mxu0 0.0
  %1804 = vmatprep.subr.mxu0 0.0
  %1805 = vmatpush1.msra.mxu0 0.0
  %1806 = vmatprep.subr.mxu0 0.0
  %1807 = vmatpush1.msra.mxu0 0.0
  %1808 = vmatprep.subr.mxu0 0.0
  %1809 = vmatpush1.msra.mxu0 0.0
  %1810 = vmatprep.subr.mxu0 0.0
  %1811 = vmatpush1.msra.mxu0 0.0
  %1812 = vmatprep.subr.mxu0 0.0
  %1813 = vmatpush1.msra.mxu0 0.0
  %1814 = vmatprep.subr.mxu0 0.0
  %1815 = vmatpush1.msra.mxu0 0.0
  %1816 = vmatprep.subr.mxu0 0.0
  %1817 = vmatpush1.msra.mxu0 0.0
  %1818 = vmatprep.subr.mxu0 0.0
  %1819 = vmatpush1.msra.mxu0 0.0
  %1820 = vmatprep.subr.mxu0 0.0
  %1821 = vmatpush1.msra.mxu0 0.0
  %1822 = vmatprep.subr.mxu0 0.0
  %1823 = vmatpush1.msra.mxu0 0.0
  %1824 = vmatprep.subr.mxu0 0.0
  %1825 = vmatpush1.msra.mxu0 0.0
  %1826 = vmatprep.subr.mxu0 0.0
  %1827 = vmatpush1.msra.mxu0 0.0
  %1828 = vmatprep.subr.mxu0 0.0
  %1829 = vmatpush1.msra.mxu0 0.0
  %1830 = vmatprep.subr.mxu0 0.0
  %1831 = vmatpush1.msra.mxu0 0.0
  %1832 = vmatprep.subr.mxu0 0.0
  %1833 = vmatpush1.msra.mxu0 0.0
  %1834 = vmatprep.subr.mxu0 0.0
  %1835 = vmatpush1.msra.mxu0 0.0
  %1836 = vmatprep.subr.mxu0 0.0
  %1837 = vmatpush1.msra.mxu0 0.0
  %1838 = vmatprep.subr.mxu0 0.0
  %1839 = vmatpush1.msra.mxu0 0.0
  %1840 = vmatprep.subr.mxu0 0.0
  %1841 = vmatpush1.msra.mxu0 0.0
  %1842 = vmatprep.subr.mxu0 0.0
  %1843 = vmatpush1.msra.mxu0 0.0
  %1844 = vmatprep.subr.mxu0 0.0
  %1845 = vmatpush1.msra.mxu0 0.0
  %1846 = vmatprep.subr.mxu0 0.0
  %1847 = vmatpush1.msra.mxu0 0.0
  %1848 = vmatprep.subr.mxu0 0.0
  %1849 = vmatpush1.msra.mxu0 0.0
  %1850 = vmatprep.subr.mxu0 0.0
  %1851 = vmatpush1.msra.mxu0 0.0
  %1852 = vmatprep.subr.mxu0 0.0
  %1853 = vmatpush1.msra.mxu0 0.0
  %1854 = vmatprep.mubr.f32.mxu0 0.0
  %1855 = vmatmul.mubr.f32.gmra.mrb[0].mxu0 %v1696
  %v1856 = vpop.f32.mrb[0].mxu0
  %v1857 = vadd.f32 0.0, %v1856
  %v1858 = vpop.f32.mrb[0].mxu0
  %1859 = vdwg.mxu0
  %v1860 = vadd.f32 %v173, %v1857
  %v1861 = vmul.f32 %v1860, %v193
  %v1862 = vtanh.pop %v1861
  %v1863 = vmul.f32 %v1862, %v193
  %v1864 = vadd.f32 %v1863, %v194
  %v1865 = vmul.f32 %v1864, %v1611
  %1867 = vrot.lane.b32.xlu0 %v1864, 64
  %v1868 = vpop.permute.xlu0 %1867
  %v1870 = vmul.f32 %v1864, %v1868
  %1872 = vrot.lane.b32.xlu0 %v1870, 32
  %v1873 = vpop.permute.xlu0 %1872
  %v1875 = vadd.f32 %v1865, %v1873
  %v1876 = vtanh.pop %v1875
  %1878 = vrot.lane.b32.xlu0 %v1876, 64
  %v1879 = vpop.permute.xlu0 %1878
  %v1881 = vmul.f32 %v1864, %v1879
  %1883 = vrot.lane.b32.xlu0 %v1789, 32
  %v1884 = vpop.permute.xlu0 %1883
  %v1885 = vsel %vm199, %v1884, 0
  %1887 = vmatprep.subr.mxu0 0.0
  %1888 = vmatpush1.msra.mxu0 %v299
  %1889 = vmatprep.subr.mxu0 0.0
  %1890 = vmatpush1.msra.mxu0 %v300
  %1891 = vmatprep.subr.mxu0 0.0
  %1892 = vmatpush1.msra.mxu0 %v301
  %1893 = vmatprep.subr.mxu0 0.0
  %1894 = vmatpush1.msra.mxu0 %v302
  %1895 = vmatprep.subr.mxu0 0.0
  %1896 = vmatpush1.msra.mxu0 0.0
  %1897 = vmatprep.subr.mxu0 0.0
  %1898 = vmatpush1.msra.mxu0 0.0
  %1899 = vmatprep.subr.mxu0 0.0
  %1900 = vmatpush1.msra.mxu0 0.0
  %1901 = vmatprep.subr.mxu0 0.0
  %1902 = vmatpush1.msra.mxu0 0.0
  %1903 = vmatprep.subr.mxu0 0.0
  %1904 = vmatpush1.msra.mxu0 0.0
  %1905 = vmatprep.subr.mxu0 0.0
  %1906 = vmatpush1.msra.mxu0 0.0
  %1907 = vmatprep.subr.mxu0 0.0
  %1908 = vmatpush1.msra.mxu0 0.0
  %1909 = vmatprep.subr.mxu0 0.0
  %1910 = vmatpush1.msra.mxu0 0.0
  %1911 = vmatprep.subr.mxu0 0.0
  %1912 = vmatpush1.msra.mxu0 0.0
  %1913 = vmatprep.subr.mxu0 0.0
  %1914 = vmatpush1.msra.mxu0 0.0
  %1915 = vmatprep.subr.mxu0 0.0
  %1916 = vmatpush1.msra.mxu0 0.0
  %1917 = vmatprep.subr.mxu0 0.0
  %1918 = vmatpush1.msra.mxu0 0.0
  %1919 = vmatprep.subr.mxu0 0.0
  %1920 = vmatpush1.msra.mxu0 0.0
  %1921 = vmatprep.subr.mxu0 0.0
  %1922 = vmatpush1.msra.mxu0 0.0
  %1923 = vmatprep.subr.mxu0 0.0
  %1924 = vmatpush1.msra.mxu0 0.0
  %1925 = vmatprep.subr.mxu0 0.0
  %1926 = vmatpush1.msra.mxu0 0.0
  %1927 = vmatprep.subr.mxu0 0.0
  %1928 = vmatpush1.msra.mxu0 0.0
  %1929 = vmatprep.subr.mxu0 0.0
  %1930 = vmatpush1.msra.mxu0 0.0
  %1931 = vmatprep.subr.mxu0 0.0
  %1932 = vmatpush1.msra.mxu0 0.0
  %1933 = vmatprep.subr.mxu0 0.0
  %1934 = vmatpush1.msra.mxu0 0.0
  %1935 = vmatprep.subr.mxu0 0.0
  %1936 = vmatpush1.msra.mxu0 0.0
  %1937 = vmatprep.subr.mxu0 0.0
  %1938 = vmatpush1.msra.mxu0 0.0
  %1939 = vmatprep.subr.mxu0 0.0
  %1940 = vmatpush1.msra.mxu0 0.0
  %1941 = vmatprep.subr.mxu0 0.0
  %1942 = vmatpush1.msra.mxu0 0.0
  %1943 = vmatprep.subr.mxu0 0.0
  %1944 = vmatpush1.msra.mxu0 0.0
  %1945 = vmatprep.subr.mxu0 0.0
  %1946 = vmatpush1.msra.mxu0 0.0
  %1947 = vmatprep.subr.mxu0 0.0
  %1948 = vmatpush1.msra.mxu0 0.0
  %1949 = vmatprep.subr.mxu0 0.0
  %1950 = vmatpush1.msra.mxu0 0.0
  %1951 = vmatprep.mubr.f32.mxu0 0.0
  %1952 = vmatmul.mubr.f32.gmra.mrb[0].mxu0 %v1885
  %v1953 = vpop.f32.mrb[0].mxu0
  %v1954 = vadd.f32 0.0, %v1953
  %v1955 = vpop.f32.mrb[0].mxu0
  %1956 = vdwg.mxu0
  %1958 = vrot.lane.b32.xlu0 %v1881, 32
  %v1959 = vpop.permute.xlu0 %1958
  %v1960 = vsel %vm199, %v1959, 0
  %1962 = vmatprep.subr.mxu0 0.0
  %1963 = vmatpush1.msra.mxu0 %v295
  %1964 = vmatprep.subr.mxu0 0.0
  %1965 = vmatpush1.msra.mxu0 %v296
  %1966 = vmatprep.subr.mxu0 0.0
  %1967 = vmatpush1.msra.mxu0 %v297
  %1968 = vmatprep.subr.mxu0 0.0
  %1969 = vmatpush1.msra.mxu0 %v298
  %1970 = vmatprep.subr.mxu0 0.0
  %1971 = vmatpush1.msra.mxu0 0.0
  %1972 = vmatprep.subr.mxu0 0.0
  %1973 = vmatpush1.msra.mxu0 0.0
  %1974 = vmatprep.subr.mxu0 0.0
  %1975 = vmatpush1.msra.mxu0 0.0
  %1976 = vmatprep.subr.mxu0 0.0
  %1977 = vmatpush1.msra.mxu0 0.0
  %1978 = vmatprep.subr.mxu0 0.0
  %1979 = vmatpush1.msra.mxu0 0.0
  %1980 = vmatprep.subr.mxu0 0.0
  %1981 = vmatpush1.msra.mxu0 0.0
  %1982 = vmatprep.subr.mxu0 0.0
  %1983 = vmatpush1.msra.mxu0 0.0
  %1984 = vmatprep.subr.mxu0 0.0
  %1985 = vmatpush1.msra.mxu0 0.0
  %1986 = vmatprep.subr.mxu0 0.0
  %1987 = vmatpush1.msra.mxu0 0.0
  %1988 = vmatprep.subr.mxu0 0.0
  %1989 = vmatpush1.msra.mxu0 0.0
  %1990 = vmatprep.subr.mxu0 0.0
  %1991 = vmatpush1.msra.mxu0 0.0
  %1992 = vmatprep.subr.mxu0 0.0
  %1993 = vmatpush1.msra.mxu0 0.0
  %1994 = vmatprep.subr.mxu0 0.0
  %1995 = vmatpush1.msra.mxu0 0.0
  %1996 = vmatprep.subr.mxu0 0.0
  %1997 = vmatpush1.msra.mxu0 0.0
  %1998 = vmatprep.subr.mxu0 0.0
  %1999 = vmatpush1.msra.mxu0 0.0
  %2000 = vmatprep.subr.mxu0 0.0
  %2001 = vmatpush1.msra.mxu0 0.0
  %2002 = vmatprep.subr.mxu0 0.0
  %2003 = vmatpush1.msra.mxu0 0.0
  %2004 = vmatprep.subr.mxu0 0.0
  %2005 = vmatpush1.msra.mxu0 0.0
  %2006 = vmatprep.subr.mxu0 0.0
  %2007 = vmatpush1.msra.mxu0 0.0
  %2008 = vmatprep.subr.mxu0 0.0
  %2009 = vmatpush1.msra.mxu0 0.0
  %2010 = vmatprep.subr.mxu0 0.0
  %2011 = vmatpush1.msra.mxu0 0.0
  %2012 = vmatprep.subr.mxu0 0.0
  %2013 = vmatpush1.msra.mxu0 0.0
  %2014 = vmatprep.subr.mxu0 0.0
  %2015 = vmatpush1.msra.mxu0 0.0
  %2016 = vmatprep.subr.mxu0 0.0
  %2017 = vmatpush1.msra.mxu0 0.0
  %2018 = vmatprep.subr.mxu0 0.0
  %2019 = vmatpush1.msra.mxu0 0.0
  %2020 = vmatprep.subr.mxu0 0.0
  %2021 = vmatpush1.msra.mxu0 0.0
  %2022 = vmatprep.subr.mxu0 0.0
  %2023 = vmatpush1.msra.mxu0 0.0
  %2024 = vmatprep.subr.mxu0 0.0
  %2025 = vmatpush1.msra.mxu0 0.0
  %2026 = vmatprep.mubr.f32.mxu0 0.0
  %2027 = vmatmul.mubr.f32.gmra.mrb[0].mxu0 %v1960
  %v2028 = vpop.f32.mrb[0].mxu0
  %v2029 = vadd.f32 %v1954, %v2028
  %v2030 = vpop.f32.mrb[0].mxu0
  %2031 = vdwg.mxu0
  %v2032 = vadd.f32 %v2029, %v186
  %v2033 = vmul.f32 %v2032, %v193
  %v2034 = vtanh.pop %v2033
  %v2035 = vmul.f32 %v2034, %v193
  %v2036 = vadd.f32 %v2035, %v194
  %v2037 = vmul.f32 %v2036, %v1783
  %2039 = vrot.lane.b32.xlu0 %v2036, 64
  %v2040 = vpop.permute.xlu0 %2039
  %v2042 = vmul.f32 %v2036, %v2040
  %2044 = vrot.lane.b32.xlu0 %v2042, 32
  %v2045 = vpop.permute.xlu0 %2044
  %v2047 = vadd.f32 %v2037, %v2045
  %v2048 = vtanh.pop %v2047
  %2050 = vrot.lane.b32.xlu0 %v2048, 64
  %v2051 = vpop.permute.xlu0 %2050
  %v2053 = vmul.f32 %v2036, %v2051
  %2054 = vmatprep.subr.mxu0 0.0
  %2055 = vmatpush1.msra.mxu0 %v195
  %2056 = vmatprep.subr.mxu0 0.0
  %2057 = vmatpush1.msra.mxu0 %v196
  %2058 = vmatprep.subr.mxu0 0.0
  %2059 = vmatpush1.msra.mxu0 %v197
  %2060 = vmatprep.subr.mxu0 0.0
  %2061 = vmatpush1.msra.mxu0 %v198
  %2062 = vmatprep.subr.mxu0 0.0
  %2063 = vmatpush1.msra.mxu0 0.0
  %2064 = vmatprep.subr.mxu0 0.0
  %2065 = vmatpush1.msra.mxu0 0.0
  %2066 = vmatprep.subr.mxu0 0.0
  %2067 = vmatpush1.msra.mxu0 0.0
  %2068 = vmatprep.subr.mxu0 0.0
  %2069 = vmatpush1.msra.mxu0 0.0
  %2070 = vmatprep.subr.mxu0 0.0
  %2071 = vmatpush1.msra.mxu0 0.0
  %2072 = vmatprep.subr.mxu0 0.0
  %2073 = vmatpush1.msra.mxu0 0.0
  %2074 = vmatprep.subr.mxu0 0.0
  %2075 = vmatpush1.msra.mxu0 0.0
  %2076 = vmatprep.subr.mxu0 0.0
  %2077 = vmatpush1.msra.mxu0 0.0
  %2078 = vmatprep.subr.mxu0 0.0
  %2079 = vmatpush1.msra.mxu0 0.0
  %2080 = vmatprep.subr.mxu0 0.0
  %2081 = vmatpush1.msra.mxu0 0.0
  %2082 = vmatprep.subr.mxu0 0.0
  %2083 = vmatpush1.msra.mxu0 0.0
  %2084 = vmatprep.subr.mxu0 0.0
  %2085 = vmatpush1.msra.mxu0 0.0
  %2086 = vmatprep.subr.mxu0 0.0
  %2087 = vmatpush1.msra.mxu0 0.0
  %2088 = vmatprep.subr.mxu0 0.0
  %2089 = vmatpush1.msra.mxu0 0.0
  %2090 = vmatprep.subr.mxu0 0.0
  %2091 = vmatpush1.msra.mxu0 0.0
  %2092 = vmatprep.subr.mxu0 0.0
  %2093 = vmatpush1.msra.mxu0 0.0
  %2094 = vmatprep.subr.mxu0 0.0
  %2095 = vmatpush1.msra.mxu0 0.0
  %2096 = vmatprep.subr.mxu0 0.0
  %2097 = vmatpush1.msra.mxu0 0.0
  %2098 = vmatprep.subr.mxu0 0.0
  %2099 = vmatpush1.msra.mxu0 0.0
  %2100 = vmatprep.subr.mxu0 0.0
  %2101 = vmatpush1.msra.mxu0 0.0
  %2102 = vmatprep.subr.mxu0 0.0
  %2103 = vmatpush1.msra.mxu0 0.0
  %2104 = vmatprep.subr.mxu0 0.0
  %2105 = vmatpush1.msra.mxu0 0.0
  %2106 = vmatprep.subr.mxu0 0.0
  %2107 = vmatpush1.msra.mxu0 0.0
  %2108 = vmatprep.subr.mxu0 0.0
  %2109 = vmatpush1.msra.mxu0 0.0
  %2110 = vmatprep.subr.mxu0 0.0
  %2111 = vmatpush1.msra.mxu0 0.0
  %2112 = vmatprep.subr.mxu0 0.0
  %2113 = vmatpush1.msra.mxu0 0.0
  %2114 = vmatprep.subr.mxu0 0.0
  %2115 = vmatpush1.msra.mxu0 0.0
  %2116 = vmatprep.subr.mxu0 0.0
  %2117 = vmatpush1.msra.mxu0 0.0
  %2118 = vmatprep.mubr.f32.mxu0 0.0
  %2119 = vmatmul.mubr.f32.gmra.mrb[0].mxu0 %v1960
  %v2120 = vpop.f32.mrb[0].mxu0
  %v2121 = vadd.f32 0.0, %v2120
  %v2122 = vpop.f32.mrb[0].mxu0
  %2123 = vdwg.mxu0
  %v2124 = vadd.f32 %v178, %v2121
  %v2125 = vmul.f32 %v2124, %v193
  %v2126 = vtanh.pop %v2125
  %v2127 = vmul.f32 %v2126, %v193
  %v2128 = vadd.f32 %v2127, %v194
  %v2129 = vmul.f32 %v2128, %v1875
  %2131 = vrot.lane.b32.xlu0 %v2128, 64
  %v2132 = vpop.permute.xlu0 %2131
  %v2134 = vmul.f32 %v2128, %v2132
  %2136 = vrot.lane.b32.xlu0 %v2134, 32
  %v2137 = vpop.permute.xlu0 %2136
  %v2139 = vadd.f32 %v2129, %v2137
  %v2140 = vtanh.pop %v2139
  %2142 = vrot.lane.b32.xlu0 %v2140, 64
  %v2143 = vpop.permute.xlu0 %2142
  %v2145 = vmul.f32 %v2128, %v2143
  %2147 = vrot.lane.b32.xlu0 %v2053, 32
  %v2148 = vpop.permute.xlu0 %2147
  %v2149 = vsel %vm199, %v2148, 0
  %2151 = vmatprep.subr.mxu0 0.0
  %2152 = vmatpush1.msra.mxu0 %v299
  %2153 = vmatprep.subr.mxu0 0.0
  %2154 = vmatpush1.msra.mxu0 %v300
  %2155 = vmatprep.subr.mxu0 0.0
  %2156 = vmatpush1.msra.mxu0 %v301
  %2157 = vmatprep.subr.mxu0 0.0
  %2158 = vmatpush1.msra.mxu0 %v302
  %2159 = vmatprep.subr.mxu0 0.0
  %2160 = vmatpush1.msra.mxu0 0.0
  %2161 = vmatprep.subr.mxu0 0.0
  %2162 = vmatpush1.msra.mxu0 0.0
  %2163 = vmatprep.subr.mxu0 0.0
  %2164 = vmatpush1.msra.mxu0 0.0
  %2165 = vmatprep.subr.mxu0 0.0
  %2166 = vmatpush1.msra.mxu0 0.0
  %2167 = vmatprep.subr.mxu0 0.0
  %2168 = vmatpush1.msra.mxu0 0.0
  %2169 = vmatprep.subr.mxu0 0.0
  %2170 = vmatpush1.msra.mxu0 0.0
  %2171 = vmatprep.subr.mxu0 0.0
  %2172 = vmatpush1.msra.mxu0 0.0
  %2173 = vmatprep.subr.mxu0 0.0
  %2174 = vmatpush1.msra.mxu0 0.0
  %2175 = vmatprep.subr.mxu0 0.0
  %2176 = vmatpush1.msra.mxu0 0.0
  %2177 = vmatprep.subr.mxu0 0.0
  %2178 = vmatpush1.msra.mxu0 0.0
  %2179 = vmatprep.subr.mxu0 0.0
  %2180 = vmatpush1.msra.mxu0 0.0
  %2181 = vmatprep.subr.mxu0 0.0
  %2182 = vmatpush1.msra.mxu0 0.0
  %2183 = vmatprep.subr.mxu0 0.0
  %2184 = vmatpush1.msra.mxu0 0.0
  %2185 = vmatprep.subr.mxu0 0.0
  %2186 = vmatpush1.msra.mxu0 0.0
  %2187 = vmatprep.subr.mxu0 0.0
  %2188 = vmatpush1.msra.mxu0 0.0
  %2189 = vmatprep.subr.mxu0 0.0
  %2190 = vmatpush1.msra.mxu0 0.0
  %2191 = vmatprep.subr.mxu0 0.0
  %2192 = vmatpush1.msra.mxu0 0.0
  %2193 = vmatprep.subr.mxu0 0.0
  %2194 = vmatpush1.msra.mxu0 0.0
  %2195 = vmatprep.subr.mxu0 0.0
  %2196 = vmatpush1.msra.mxu0 0.0
  %2197 = vmatprep.subr.mxu0 0.0
  %2198 = vmatpush1.msra.mxu0 0.0
  %2199 = vmatprep.subr.mxu0 0.0
  %2200 = vmatpush1.msra.mxu0 0.0
  %2201 = vmatprep.subr.mxu0 0.0
  %2202 = vmatpush1.msra.mxu0 0.0
  %2203 = vmatprep.subr.mxu0 0.0
  %2204 = vmatpush1.msra.mxu0 0.0
  %2205 = vmatprep.subr.mxu0 0.0
  %2206 = vmatpush1.msra.mxu0 0.0
  %2207 = vmatprep.subr.mxu0 0.0
  %2208 = vmatpush1.msra.mxu0 0.0
  %2209 = vmatprep.subr.mxu0 0.0
  %2210 = vmatpush1.msra.mxu0 0.0
  %2211 = vmatprep.subr.mxu0 0.0
  %2212 = vmatpush1.msra.mxu0 0.0
  %2213 = vmatprep.subr.mxu0 0.0
  %2214 = vmatpush1.msra.mxu0 0.0
  %2215 = vmatprep.mubr.f32.mxu0 0.0
  %2216 = vmatmul.mubr.f32.gmra.mrb[0].mxu0 %v2149
  %v2217 = vpop.f32.mrb[0].mxu0
  %v2218 = vadd.f32 0.0, %v2217
  %v2219 = vpop.f32.mrb[0].mxu0
  %2220 = vdwg.mxu0
  %2222 = vrot.lane.b32.xlu0 %v2145, 32
  %v2223 = vpop.permute.xlu0 %2222
  %v2224 = vsel %vm199, %v2223, 0
  %2226 = vmatprep.subr.mxu0 0.0
  %2227 = vmatpush1.msra.mxu0 %v295
  %2228 = vmatprep.subr.mxu0 0.0
  %2229 = vmatpush1.msra.mxu0 %v296
  %2230 = vmatprep.subr.mxu0 0.0
  %2231 = vmatpush1.msra.mxu0 %v297
  %2232 = vmatprep.subr.mxu0 0.0
  %2233 = vmatpush1.msra.mxu0 %v298
  %2234 = vmatprep.subr.mxu0 0.0
  %2235 = vmatpush1.msra.mxu0 0.0
  %2236 = vmatprep.subr.mxu0 0.0
  %2237 = vmatpush1.msra.mxu0 0.0
  %2238 = vmatprep.subr.mxu0 0.0
  %2239 = vmatpush1.msra.mxu0 0.0
  %2240 = vmatprep.subr.mxu0 0.0
  %2241 = vmatpush1.msra.mxu0 0.0
  %2242 = vmatprep.subr.mxu0 0.0
  %2243 = vmatpush1.msra.mxu0 0.0
  %2244 = vmatprep.subr.mxu0 0.0
  %2245 = vmatpush1.msra.mxu0 0.0
  %2246 = vmatprep.subr.mxu0 0.0
  %2247 = vmatpush1.msra.mxu0 0.0
  %2248 = vmatprep.subr.mxu0 0.0
  %2249 = vmatpush1.msra.mxu0 0.0
  %2250 = vmatprep.subr.mxu0 0.0
  %2251 = vmatpush1.msra.mxu0 0.0
  %2252 = vmatprep.subr.mxu0 0.0
  %2253 = vmatpush1.msra.mxu0 0.0
  %2254 = vmatprep.subr.mxu0 0.0
  %2255 = vmatpush1.msra.mxu0 0.0
  %2256 = vmatprep.subr.mxu0 0.0
  %2257 = vmatpush1.msra.mxu0 0.0
  %2258 = vmatprep.subr.mxu0 0.0
  %2259 = vmatpush1.msra.mxu0 0.0
  %2260 = vmatprep.subr.mxu0 0.0
  %2261 = vmatpush1.msra.mxu0 0.0
  %2262 = vmatprep.subr.mxu0 0.0
  %2263 = vmatpush1.msra.mxu0 0.0
  %2264 = vmatprep.subr.mxu0 0.0
  %2265 = vmatpush1.msra.mxu0 0.0
  %2266 = vmatprep.subr.mxu0 0.0
  %2267 = vmatpush1.msra.mxu0 0.0
  %2268 = vmatprep.subr.mxu0 0.0
  %2269 = vmatpush1.msra.mxu0 0.0
  %2270 = vmatprep.subr.mxu0 0.0
  %2271 = vmatpush1.msra.mxu0 0.0
  %2272 = vmatprep.subr.mxu0 0.0
  %2273 = vmatpush1.msra.mxu0 0.0
  %2274 = vmatprep.subr.mxu0 0.0
  %2275 = vmatpush1.msra.mxu0 0.0
  %2276 = vmatprep.subr.mxu0 0.0
  %2277 = vmatpush1.msra.mxu0 0.0
  %2278 = vmatprep.subr.mxu0 0.0
  %2279 = vmatpush1.msra.mxu0 0.0
  %2280 = vmatprep.subr.mxu0 0.0
  %2281 = vmatpush1.msra.mxu0 0.0
  %2282 = vmatprep.subr.mxu0 0.0
  %2283 = vmatpush1.msra.mxu0 0.0
  %2284 = vmatprep.subr.mxu0 0.0
  %2285 = vmatpush1.msra.mxu0 0.0
  %2286 = vmatprep.subr.mxu0 0.0
  %2287 = vmatpush1.msra.mxu0 0.0
  %2288 = vmatprep.subr.mxu0 0.0
  %2289 = vmatpush1.msra.mxu0 0.0
  %2290 = vmatprep.mubr.f32.mxu0 0.0
  %2291 = vmatmul.mubr.f32.gmra.mrb[0].mxu0 %v2224
  %v2292 = vpop.f32.mrb[0].mxu0
  %v2293 = vadd.f32 %v2218, %v2292
  %v2294 = vpop.f32.mrb[0].mxu0
  %2295 = vdwg.mxu0
  %v2296 = vadd.f32 %v2293, %v186
  %v2297 = vmul.f32 %v2296, %v193
  %v2298 = vtanh.pop %v2297
  %v2299 = vmul.f32 %v2298, %v193
  %v2300 = vadd.f32 %v2299, %v194
  %v2301 = vmul.f32 %v2300, %v2047
  %2303 = vrot.lane.b32.xlu0 %v2300, 64
  %v2304 = vpop.permute.xlu0 %2303
  %v2306 = vmul.f32 %v2300, %v2304
  %2308 = vrot.lane.b32.xlu0 %v2306, 32
  %v2309 = vpop.permute.xlu0 %2308
  %v2311 = vadd.f32 %v2301, %v2309
  %v2312 = vtanh.pop %v2311
  %2314 = vrot.lane.b32.xlu0 %v2312, 64
  %v2315 = vpop.permute.xlu0 %2314
  %v2317 = vmul.f32 %v2300, %v2315
  %v2318 = vld [vmem:[%s7] sm:$0xff]
  %v2319 = vld [vmem:[%s7 + $0x8] sm:$0xff]
  %v2320 = vld [vmem:[%s7 + $0x10] sm:$0xff]
  %v2321 = vld [vmem:[%s7 + $0x18] sm:$0xff]
  %v2322 = vld [vmem:[#allocation2] sm:$0x1]
  %v2324 = vlaneseq
  %v2325 = vshrl.u32 %v2324, 7
  %v2326 = vsub.s32 0, %v2325
  %v2327 = vrot.slane %v2322, %v2326
  %2330 = vrot.lane.b32.xlu0 %v2317, 32
  %v2331 = vpop.permute.xlu0 %2330
  %v2332 = vsel %vm199, %v2331, 0
  %2334 = vmatprep.subr.mxu0 0.0
  %2335 = vmatpush1.msra.mxu0 %v2318
  %2336 = vmatprep.subr.mxu0 0.0
  %2337 = vmatpush1.msra.mxu0 %v2319
  %2338 = vmatprep.subr.mxu0 0.0
  %2339 = vmatpush1.msra.mxu0 %v2320
  %2340 = vmatprep.subr.mxu0 0.0
  %2341 = vmatpush1.msra.mxu0 %v2321
  %2342 = vmatprep.subr.mxu0 0.0
  %2343 = vmatpush1.msra.mxu0 0.0
  %2344 = vmatprep.subr.mxu0 0.0
  %2345 = vmatpush1.msra.mxu0 0.0
  %2346 = vmatprep.subr.mxu0 0.0
  %2347 = vmatpush1.msra.mxu0 0.0
  %2348 = vmatprep.subr.mxu0 0.0
  %2349 = vmatpush1.msra.mxu0 0.0
  %2350 = vmatprep.subr.mxu0 0.0
  %2351 = vmatpush1.msra.mxu0 0.0
  %2352 = vmatprep.subr.mxu0 0.0
  %2353 = vmatpush1.msra.mxu0 0.0
  %2354 = vmatprep.subr.mxu0 0.0
  %2355 = vmatpush1.msra.mxu0 0.0
  %2356 = vmatprep.subr.mxu0 0.0
  %2357 = vmatpush1.msra.mxu0 0.0
  %2358 = vmatprep.subr.mxu0 0.0
  %2359 = vmatpush1.msra.mxu0 0.0
  %2360 = vmatprep.subr.mxu0 0.0
  %2361 = vmatpush1.msra.mxu0 0.0
  %2362 = vmatprep.subr.mxu0 0.0
  %2363 = vmatpush1.msra.mxu0 0.0
  %2364 = vmatprep.subr.mxu0 0.0
  %2365 = vmatpush1.msra.mxu0 0.0
  %2366 = vmatprep.subr.mxu0 0.0
  %2367 = vmatpush1.msra.mxu0 0.0
  %2368 = vmatprep.subr.mxu0 0.0
  %2369 = vmatpush1.msra.mxu0 0.0
  %2370 = vmatprep.subr.mxu0 0.0
  %2371 = vmatpush1.msra.mxu0 0.0
  %2372 = vmatprep.subr.mxu0 0.0
  %2373 = vmatpush1.msra.mxu0 0.0
  %2374 = vmatprep.subr.mxu0 0.0
  %2375 = vmatpush1.msra.mxu0 0.0
  %2376 = vmatprep.subr.mxu0 0.0
  %2377 = vmatpush1.msra.mxu0 0.0
  %2378 = vmatprep.subr.mxu0 0.0
  %2379 = vmatpush1.msra.mxu0 0.0
  %2380 = vmatprep.subr.mxu0 0.0
  %2381 = vmatpush1.msra.mxu0 0.0
  %2382 = vmatprep.subr.mxu0 0.0
  %2383 = vmatpush1.msra.mxu0 0.0
  %2384 = vmatprep.subr.mxu0 0.0
  %2385 = vmatpush1.msra.mxu0 0.0
  %2386 = vmatprep.subr.mxu0 0.0
  %2387 = vmatpush1.msra.mxu0 0.0
  %2388 = vmatprep.subr.mxu0 0.0
  %2389 = vmatpush1.msra.mxu0 0.0
  %2390 = vmatprep.subr.mxu0 0.0
  %2391 = vmatpush1.msra.mxu0 0.0
  %2392 = vmatprep.subr.mxu0 0.0
  %2393 = vmatpush1.msra.mxu0 0.0
  %2394 = vmatprep.subr.mxu0 0.0
  %2395 = vmatpush1.msra.mxu0 0.0
  %2396 = vmatprep.subr.mxu0 0.0
  %2397 = vmatpush1.msra.mxu0 0.0
  %2398 = vmatprep.mubr.f32.mxu0 0.0
  %2399 = vmatmul.mubr.f32.gmra.mrb[0].mxu0 %v2332
  %v2400 = vpop.f32.mrb[0].mxu0
  %v2401 = vadd.f32 %v2327, %v2400
  %v2402 = vpop.f32.mrb[0].mxu0
  %2403 = vdwg.mxu0
  %vm2404 = vcmask 7168
  %2405 = vst.msk [vmem:[%s9] sm:$0xff] %vm2404, %v2401
  // Predicated region
  $region38: #{lstm_forward.1} parent=0 // pred_check
    _
  $region39: #{lstm_forward.1} parent=0 // pred_check_branch
    %2407 = sbr.rel (0) target = $region41
  $region40: #{lstm_forward.1} parent=0 // pred_region
    _
  $region41: #{lstm_forward.1} parent=0 // pred_fallthru
    _
  // Predicated region
  $region42: #{lstm_forward.1} parent=0 // pred_check
    _
  $region43: #{lstm_forward.1} parent=0 // pred_check_branch
    %2409 = sbr.rel (0) target = $region45
  $region44: #{lstm_forward.1} parent=0 // pred_region
    _
  $region45: #{lstm_forward.1} parent=0 // pred_fallthru
    _

</llo_original>
